<compile_context>
chip_gen: v6e
topology: v6e:2x2x1
jax: 0.10.0
libtpu: 0.0.40
codegen_flags: <defaults>
</compile_context>

<pallas_src>
import functools

import jax
import jax.numpy as jnp
from jax.experimental import pallas as pl
from jax.experimental.pallas import tpu as pltpu

LN_EPS = 1e-5
IN_PAD = 128       # each 80-wide input half padded to 128 lanes
OUT_PAD = 128      # 80-wide output padded to 128 lanes
Z_DIM = 2 * IN_PAD  # concatenated [x_pad | mask_pad]


def _round_up(a, b):
    return (a + b - 1) // b * b


def _mish(x):
    # x * tanh(softplus(x)) rewritten with a single exponential.
    # For x >= 20 the exact value is x to within f32 precision, so clamping
    # the exp argument both avoids overflow and is numerically exact.
    e = jnp.exp(jnp.minimum(x, 20.0))
    n = e * (e + 2.0)
    return x * n / (n + 2.0)


def _layernorm(x, gamma, beta, dim):
    # One-pass statistics: mean and mean-of-squares.  `dim` is the number of
    # *valid* lanes; padded lanes are guaranteed zero so the sums are exact.
    inv_dim = 1.0 / dim
    mu = jnp.sum(x, axis=-1, keepdims=True) * inv_dim
    ms = jnp.sum(x * x, axis=-1, keepdims=True) * inv_dim
    var = ms - mu * mu
    inv = jax.lax.rsqrt(var + LN_EPS)
    return (x - mu) * inv * gamma + beta


def dae_kernel(
    z_ref,                                   # (TILE_B, 256)  [x_pad | mask_pad]
    s1_w_ref, s1_b_ref,                      # folded embed+seq1: (256,48),(1,48)
    ln1_g_ref, ln1_b_ref,                    # LayerNorm(48)
    m1_w_ref, m1_b_ref, lnA_g_ref, lnA_b_ref,  # Linear(48,512)+Mish+LN(512)
    m2_w_ref, m2_b_ref, lnB_g_ref, lnB_b_ref,  # Linear(512,256)+Mish+LN(256)
    m3_w_ref, m3_b_ref, lnC_g_ref, lnC_b_ref,  # Linear(256,80->128pad)+Mish+LN(80)
    out_ref,                                 # (TILE_B, 128)  lanes 80..127 are 0
):
    z = z_ref[...]

    # embed + seq1 (folded): Linear(80,60)/Linear(80,20)/cat/Linear(80,48)
    h = jnp.dot(z, s1_w_ref[...], preferred_element_type=jnp.float32) + s1_b_ref[...]
    h = _layernorm(h, ln1_g_ref[...], ln1_b_ref[...], 48.0)

    # mlp block 1: Linear(48,512) -> Mish -> LayerNorm(512)
    h = jnp.dot(h, m1_w_ref[...], preferred_element_type=jnp.float32) + m1_b_ref[...]
    h = _layernorm(_mish(h), lnA_g_ref[...], lnA_b_ref[...], 512.0)

    # mlp block 2: Linear(512,256) -> Mish -> LayerNorm(256)
    h = jnp.dot(h, m2_w_ref[...], preferred_element_type=jnp.float32) + m2_b_ref[...]
    h = _layernorm(_mish(h), lnB_g_ref[...], lnB_b_ref[...], 256.0)

    # mlp block 3: Linear(256,80) -> Mish -> LayerNorm(80)   (80 padded to 128;
    # padded pre-activations are exactly 0, Mish(0)=0, LN uses divisor 80)
    h = jnp.dot(h, m3_w_ref[...], preferred_element_type=jnp.float32) + m3_b_ref[...]
    h = _layernorm(_mish(h), lnC_g_ref[...], lnC_b_ref[...], 80.0)

    out_ref[...] = h


def fold_params(p):
    """Fold embed layers into seq1 and pad to lane-dense shapes (run once)."""
    w_x = p["fe_w"] @ p["s1_wt"]                                  # (80, 48)
    w_m = p["me_w"] @ p["s1_wb"]                                  # (80, 48)
    s1_b = p["fe_b"] @ p["s1_wt"] + p["me_b"] @ p["s1_wb"] + p["s1_b"]
    s1_w = jnp.concatenate(
        [jnp.pad(w_x, ((0, IN_PAD - 80), (0, 0))),
         jnp.pad(w_m, ((0, IN_PAD - 80), (0, 0)))], axis=0)        # (256, 48)

    pad_out = OUT_PAD - 80
    return dict(
        s1_w=s1_w, s1_b=s1_b,
        ln1_g=p["ln1_g"], ln1_b=p["ln1_b"],
        m1_w=p["m1_w"], m1_b=p["m1_b"], lnA_g=p["lnA_g"], lnA_b=p["lnA_b"],
        m2_w=p["m2_w"], m2_b=p["m2_b"], lnB_g=p["lnB_g"], lnB_b=p["lnB_b"],
        m3_w=jnp.pad(p["m3_w"], ((0, 0), (0, pad_out))),           # (256, 128)
        m3_b=jnp.pad(p["m3_b"], ((0, 0), (0, pad_out))),
        lnC_g=jnp.pad(p["lnC_g"], ((0, 0), (0, pad_out))),
        lnC_b=jnp.pad(p["lnC_b"], ((0, 0), (0, pad_out))),
    )


def _full_spec(a):
    return pl.BlockSpec(a.shape, lambda i: (0,) * a.ndim)


@functools.partial(jax.jit, static_argnames=("tile_b",))
def dae_forward(x, mask, kp, tile_b=1024):
    n = x.shape[0]
    tile_b = min(tile_b, _round_up(max(n, 8), 8))
    n_pad = _round_up(n, tile_b)

    # lane-dense, batch-padded input slab: [x (pad to 128) | mask (pad to 128)]
    xp = jnp.pad(x.astype(jnp.float32), ((0, n_pad - n), (0, IN_PAD - 80)))
    mp = jnp.pad(mask.astype(jnp.float32), ((0, n_pad - n), (0, IN_PAD - 80)))
    z = jnp.concatenate([xp, mp], axis=1)                          # (n_pad, 256)

    params_list = [
        kp["s1_w"], kp["s1_b"], kp["ln1_g"], kp["ln1_b"],
        kp["m1_w"], kp["m1_b"], kp["lnA_g"], kp["lnA_b"],
        kp["m2_w"], kp["m2_b"], kp["lnB_g"], kp["lnB_b"],
        kp["m3_w"], kp["m3_b"], kp["lnC_g"], kp["lnC_b"],
    ]

    grid = (n_pad // tile_b,)
    in_specs = [pl.BlockSpec((tile_b, Z_DIM), lambda i: (i, 0))]
    in_specs += [_full_spec(p) for p in params_list]
    out_specs = pl.BlockSpec((tile_b, OUT_PAD), lambda i: (i, 0))

    flops = 2 * n_pad * (Z_DIM * 48 + 48 * 512 + 512 * 256 + 256 * OUT_PAD)
    transcendentals = n_pad * (512 + 256 + OUT_PAD)
    bytes_accessed = 4 * (z.size + sum(int(p.size) for p in params_list)
                          + n_pad * OUT_PAD)

    out = pl.pallas_call(
        dae_kernel,
        out_shape=jax.ShapeDtypeStruct((n_pad, OUT_PAD), jnp.float32),
        grid=grid,
        in_specs=in_specs,
        out_specs=out_specs,
        compiler_params=pltpu.CompilerParams(
            dimension_semantics=("parallel",)),
        cost_estimate=pl.CostEstimate(
            flops=flops, transcendentals=transcendentals,
            bytes_accessed=bytes_accessed),
    )(z, *params_list)

    return out[:n, :80]


def init_params(key):
    """Deterministic synthetic parameters with nn.Module-consistent shapes."""
    ks = jax.random.split(key, 12)

    def lin(kw, kb, fan_in, fan_out):
        bound = 1.0 / jnp.sqrt(fan_in)
        w = jax.random.uniform(kw, (fan_in, fan_out), jnp.float32, -bound, bound)
        b = jax.random.uniform(kb, (1, fan_out), jnp.float32, -bound, bound)
        return w, b

    fe_w, fe_b = lin(ks[0], ks[1], 80, 60)
    me_w, me_b = lin(ks[2], ks[3], 80, 20)
    s1_w, s1_b = lin(ks[4], ks[5], 80, 48)
    m1_w, m1_b = lin(ks[6], ks[7], 48, 512)
    m2_w, m2_b = lin(ks[8], ks[9], 512, 256)
    m3_w, m3_b = lin(ks[10], ks[11], 256, 80)

    def ln(dim):  # nn.LayerNorm default: weight=1, bias=0
        return jnp.ones((1, dim), jnp.float32), jnp.zeros((1, dim), jnp.float32)

    ln1_g, ln1_b = ln(48)
    lnA_g, lnA_b = ln(512)
    lnB_g, lnB_b = ln(256)
    lnC_g, lnC_b = ln(80)

    return dict(
        fe_w=fe_w, fe_b=fe_b, me_w=me_w, me_b=me_b,
        s1_wt=s1_w[:60], s1_wb=s1_w[60:], s1_b=s1_b,
        ln1_g=ln1_g, ln1_b=ln1_b,
        m1_w=m1_w, m1_b=m1_b, lnA_g=lnA_g, lnA_b=lnA_b,
        m2_w=m2_w, m2_b=m2_b, lnB_g=lnB_g, lnB_b=lnB_b,
        m3_w=m3_w, m3_b=m3_b, lnC_g=lnC_g, lnC_b=lnC_b,
    )


def dae_reference(x, mask, p):
    """Pure-JAX reference with the original (torch-style) formulation."""
    def mish(v):
        return v * jnp.tanh(jnp.log1p(jnp.exp(v)))

    def lnorm(v, g, b):
        mu = jnp.mean(v, axis=-1, keepdims=True)
        var = jnp.mean((v - mu) ** 2, axis=-1, keepdims=True)
        return (v - mu) * jax.lax.rsqrt(var + LN_EPS) * g + b

    fe = x @ p["fe_w"] + p["fe_b"]
    me = mask @ p["me_w"] + p["me_b"]
    z = jnp.concatenate([fe, me], axis=1)
    w1 = jnp.concatenate([p["s1_wt"], p["s1_wb"]], axis=0)
    h = lnorm(z @ w1 + p["s1_b"], p["ln1_g"], p["ln1_b"])
    h = lnorm(mish(h @ p["m1_w"] + p["m1_b"]), p["lnA_g"], p["lnA_b"])
    h = lnorm(mish(h @ p["m2_w"] + p["m2_b"]), p["lnB_g"], p["lnB_b"])
    h = lnorm(mish(h @ p["m3_w"] + p["m3_b"]), p["lnC_g"], p["lnC_b"])
    return h


if __name__ == "__main__":
    key = jax.random.PRNGKey(0)
    kx, km, kp = jax.random.split(key, 3)

    N = 8  # small test batch
    x = jax.random.normal(kx, (N, 80), jnp.float32)
    mask = (jax.random.uniform(km, (N, 80)) > 0.5).astype(jnp.float32)

    params = init_params(kp)
    kernel_params = fold_params(params)   # fold embeds into seq1, pad lanes

    out = dae_forward(x, mask, kernel_params)
    out = jax.block_until_ready(out)

    ref = dae_reference(x, mask, params)
    assert out.shape == (N, 80)
    assert jnp.allclose(out, ref, rtol=1e-3, atol=1e-3), "mismatch vs reference"

    print("KERNEL_OK")
</pallas_src>

<mosaic_0001>
module attributes {stable_mosaic.version = 11 : i64} {
  func.func @dae_kernel(%arg0: i32, %arg1: memref<8x256xf32, #tpu.memory_space<vmem>>, %arg2: memref<256x48xf32, #tpu.memory_space<vmem>>, %arg3: memref<1x48xf32, #tpu.memory_space<vmem>>, %arg4: memref<1x48xf32, #tpu.memory_space<vmem>>, %arg5: memref<1x48xf32, #tpu.memory_space<vmem>>, %arg6: memref<48x512xf32, #tpu.memory_space<vmem>>, %arg7: memref<1x512xf32, #tpu.memory_space<vmem>>, %arg8: memref<1x512xf32, #tpu.memory_space<vmem>>, %arg9: memref<1x512xf32, #tpu.memory_space<vmem>>, %arg10: memref<512x256xf32, #tpu.memory_space<vmem>>, %arg11: memref<1x256xf32, #tpu.memory_space<vmem>>, %arg12: memref<1x256xf32, #tpu.memory_space<vmem>>, %arg13: memref<1x256xf32, #tpu.memory_space<vmem>>, %arg14: memref<256x128xf32, #tpu.memory_space<vmem>>, %arg15: memref<1x128xf32, #tpu.memory_space<vmem>>, %arg16: memref<1x128xf32, #tpu.memory_space<vmem>>, %arg17: memref<1x128xf32, #tpu.memory_space<vmem>>, %arg18: memref<8x128xf32, #tpu.memory_space<vmem>>) attributes {dimension_semantics = [#tpu.dimension_semantics<parallel>], iteration_bounds = array<i64: 1>, scalar_prefetch = 0 : i64, scratch_operands = 0 : i64, tpu.core_type = #tpu.core_type<tc>, window_params = [{transform_indices = @transform_0, window_bounds = array<i64: 8, 256>}, {pipeline_mode = #tpu.pipeline_mode<synchronous>, transform_indices = @transform_1, window_bounds = array<i64: 256, 48>}, {pipeline_mode = #tpu.pipeline_mode<synchronous>, transform_indices = @transform_2, window_bounds = array<i64: 1, 48>}, {pipeline_mode = #tpu.pipeline_mode<synchronous>, transform_indices = @transform_3, window_bounds = array<i64: 1, 48>}, {pipeline_mode = #tpu.pipeline_mode<synchronous>, transform_indices = @transform_4, window_bounds = array<i64: 1, 48>}, {pipeline_mode = #tpu.pipeline_mode<synchronous>, transform_indices = @transform_5, window_bounds = array<i64: 48, 512>}, {pipeline_mode = #tpu.pipeline_mode<synchronous>, transform_indices = @transform_6, window_bounds = array<i64: 1, 512>}, {pipeline_mode = #tpu.pipeline_mode<synchronous>, transform_indices = @transform_7, window_bounds = array<i64: 1, 512>}, {pipeline_mode = #tpu.pipeline_mode<synchronous>, transform_indices = @transform_8, window_bounds = array<i64: 1, 512>}, {pipeline_mode = #tpu.pipeline_mode<synchronous>, transform_indices = @transform_9, window_bounds = array<i64: 512, 256>}, {pipeline_mode = #tpu.pipeline_mode<synchronous>, transform_indices = @transform_10, window_bounds = array<i64: 1, 256>}, {pipeline_mode = #tpu.pipeline_mode<synchronous>, transform_indices = @transform_11, window_bounds = array<i64: 1, 256>}, {pipeline_mode = #tpu.pipeline_mode<synchronous>, transform_indices = @transform_12, window_bounds = array<i64: 1, 256>}, {pipeline_mode = #tpu.pipeline_mode<synchronous>, transform_indices = @transform_13, window_bounds = array<i64: 256, 128>}, {pipeline_mode = #tpu.pipeline_mode<synchronous>, transform_indices = @transform_14, window_bounds = array<i64: 1, 128>}, {pipeline_mode = #tpu.pipeline_mode<synchronous>, transform_indices = @transform_15, window_bounds = array<i64: 1, 128>}, {pipeline_mode = #tpu.pipeline_mode<synchronous>, transform_indices = @transform_16, window_bounds = array<i64: 1, 128>}, {transform_indices = @transform_17, window_bounds = array<i64: 8, 128>}]} {
    %c0 = arith.constant 0 : index
    %c0_0 = arith.constant 0 : index
    %0 = vector.load %arg1[%c0, %c0_0] : memref<8x256xf32, #tpu.memory_space<vmem>>, vector<8x256xf32>
    %c0_1 = arith.constant 0 : index
    %c0_2 = arith.constant 0 : index
    %1 = vector.load %arg2[%c0_1, %c0_2] : memref<256x48xf32, #tpu.memory_space<vmem>>, vector<256x48xf32>
    %cst = arith.constant dense<0.000000e+00> : vector<8x48xf32>
    %2 = tpu.matmul %0, %1, %cst {dimension_numbers = #tpu.dot_dimension_numbers<[1], [0], [0], [1], [0, 0, 1, 1], [], []>} : vector<8x256xf32>, vector<256x48xf32>, vector<8x48xf32> -> vector<8x48xf32>
    %c0_3 = arith.constant 0 : index
    %c0_4 = arith.constant 0 : index
    %3 = vector.load %arg3[%c0_3, %c0_4] : memref<1x48xf32, #tpu.memory_space<vmem>>, vector<1x48xf32>
    %4 = vector.broadcast %3 : vector<1x48xf32> to vector<8x48xf32>
    %5 = arith.addf %2, %4 : vector<8x48xf32>
    %c0_5 = arith.constant 0 : index
    %c0_6 = arith.constant 0 : index
    %6 = vector.load %arg4[%c0_5, %c0_6] : memref<1x48xf32, #tpu.memory_space<vmem>>, vector<1x48xf32>
    %c0_7 = arith.constant 0 : index
    %c0_8 = arith.constant 0 : index
    %7 = vector.load %arg5[%c0_7, %c0_8] : memref<1x48xf32, #tpu.memory_space<vmem>>, vector<1x48xf32>
    %cst_9 = arith.constant dense<0.000000e+00> : vector<8xf32>
    %8 = vector.multi_reduction <add>, %5, %cst_9 [1] : vector<8x48xf32> to vector<8xf32>
    %9 = vector.shape_cast %8 : vector<8xf32> to vector<8x1xf32>
    %cst_10 = arith.constant 0.020833334 : f32
    %10 = vector.broadcast %cst_10 : f32 to vector<8x1xf32>
    %11 = arith.mulf %9, %10 : vector<8x1xf32>
    %12 = arith.mulf %5, %5 : vector<8x48xf32>
    %cst_11 = arith.constant dense<0.000000e+00> : vector<8xf32>
    %13 = vector.multi_reduction <add>, %12, %cst_11 [1] : vector<8x48xf32> to vector<8xf32>
    %14 = vector.shape_cast %13 : vector<8xf32> to vector<8x1xf32>
    %cst_12 = arith.constant 0.020833334 : f32
    %15 = vector.broadcast %cst_12 : f32 to vector<8x1xf32>
    %16 = arith.mulf %14, %15 : vector<8x1xf32>
    %17 = arith.mulf %11, %11 : vector<8x1xf32>
    %18 = arith.subf %16, %17 : vector<8x1xf32>
    %cst_13 = arith.constant 9.99999974E-6 : f32
    %19 = vector.broadcast %cst_13 : f32 to vector<8x1xf32>
    %20 = arith.addf %18, %19 : vector<8x1xf32>
    %21 = math.rsqrt %20 : vector<8x1xf32>
    %22 = vector.broadcast %11 : vector<8x1xf32> to vector<8x48xf32>
    %23 = arith.subf %5, %22 : vector<8x48xf32>
    %24 = vector.broadcast %21 : vector<8x1xf32> to vector<8x48xf32>
    %25 = arith.mulf %23, %24 : vector<8x48xf32>
    %26 = vector.broadcast %6 : vector<1x48xf32> to vector<8x48xf32>
    %27 = arith.mulf %25, %26 : vector<8x48xf32>
    %28 = vector.broadcast %7 : vector<1x48xf32> to vector<8x48xf32>
    %29 = arith.addf %27, %28 : vector<8x48xf32>
    %c0_14 = arith.constant 0 : index
    %c0_15 = arith.constant 0 : index
    %30 = vector.load %arg6[%c0_14, %c0_15] : memref<48x512xf32, #tpu.memory_space<vmem>>, vector<48x512xf32>
    %cst_16 = arith.constant dense<0.000000e+00> : vector<8x512xf32>
    %31 = tpu.matmul %29, %30, %cst_16 {dimension_numbers = #tpu.dot_dimension_numbers<[1], [0], [0], [1], [0, 0, 1, 1], [], []>} : vector<8x48xf32>, vector<48x512xf32>, vector<8x512xf32> -> vector<8x512xf32>
    %c0_17 = arith.constant 0 : index
    %c0_18 = arith.constant 0 : index
    %32 = vector.load %arg7[%c0_17, %c0_18] : memref<1x512xf32, #tpu.memory_space<vmem>>, vector<1x512xf32>
    %33 = vector.broadcast %32 : vector<1x512xf32> to vector<8x512xf32>
    %34 = arith.addf %31, %33 : vector<8x512xf32>
    %cst_19 = arith.constant 2.000000e+01 : f32
    %35 = vector.broadcast %cst_19 : f32 to vector<8x512xf32>
    %36 = arith.minimumf %34, %35 : vector<8x512xf32>
    %37 = math.exp %36 : vector<8x512xf32>
    %cst_20 = arith.constant 2.000000e+00 : f32
    %38 = vector.broadcast %cst_20 : f32 to vector<8x512xf32>
    %39 = arith.addf %37, %38 : vector<8x512xf32>
    %40 = arith.mulf %37, %39 : vector<8x512xf32>
    %41 = arith.mulf %34, %40 : vector<8x512xf32>
    %cst_21 = arith.constant 2.000000e+00 : f32
    %42 = vector.broadcast %cst_21 : f32 to vector<8x512xf32>
    %43 = arith.addf %40, %42 : vector<8x512xf32>
    %44 = arith.divf %41, %43 : vector<8x512xf32>
    %c0_22 = arith.constant 0 : index
    %c0_23 = arith.constant 0 : index
    %45 = vector.load %arg8[%c0_22, %c0_23] : memref<1x512xf32, #tpu.memory_space<vmem>>, vector<1x512xf32>
    %c0_24 = arith.constant 0 : index
    %c0_25 = arith.constant 0 : index
    %46 = vector.load %arg9[%c0_24, %c0_25] : memref<1x512xf32, #tpu.memory_space<vmem>>, vector<1x512xf32>
    %cst_26 = arith.constant dense<0.000000e+00> : vector<8xf32>
    %47 = vector.multi_reduction <add>, %44, %cst_26 [1] : vector<8x512xf32> to vector<8xf32>
    %48 = vector.shape_cast %47 : vector<8xf32> to vector<8x1xf32>
    %cst_27 = arith.constant 0.001953125 : f32
    %49 = vector.broadcast %cst_27 : f32 to vector<8x1xf32>
    %50 = arith.mulf %48, %49 : vector<8x1xf32>
    %51 = arith.mulf %44, %44 : vector<8x512xf32>
    %cst_28 = arith.constant dense<0.000000e+00> : vector<8xf32>
    %52 = vector.multi_reduction <add>, %51, %cst_28 [1] : vector<8x512xf32> to vector<8xf32>
    %53 = vector.shape_cast %52 : vector<8xf32> to vector<8x1xf32>
    %cst_29 = arith.constant 0.001953125 : f32
    %54 = vector.broadcast %cst_29 : f32 to vector<8x1xf32>
    %55 = arith.mulf %53, %54 : vector<8x1xf32>
    %56 = arith.mulf %50, %50 : vector<8x1xf32>
    %57 = arith.subf %55, %56 : vector<8x1xf32>
    %cst_30 = arith.constant 9.99999974E-6 : f32
    %58 = vector.broadcast %cst_30 : f32 to vector<8x1xf32>
    %59 = arith.addf %57, %58 : vector<8x1xf32>
    %60 = math.rsqrt %59 : vector<8x1xf32>
    %61 = vector.broadcast %50 : vector<8x1xf32> to vector<8x512xf32>
    %62 = arith.subf %44, %61 : vector<8x512xf32>
    %63 = vector.broadcast %60 : vector<8x1xf32> to vector<8x512xf32>
    %64 = arith.mulf %62, %63 : vector<8x512xf32>
    %65 = vector.broadcast %45 : vector<1x512xf32> to vector<8x512xf32>
    %66 = arith.mulf %64, %65 : vector<8x512xf32>
    %67 = vector.broadcast %46 : vector<1x512xf32> to vector<8x512xf32>
    %68 = arith.addf %66, %67 : vector<8x512xf32>
    %c0_31 = arith.constant 0 : index
    %c0_32 = arith.constant 0 : index
    %69 = vector.load %arg10[%c0_31, %c0_32] : memref<512x256xf32, #tpu.memory_space<vmem>>, vector<512x256xf32>
    %cst_33 = arith.constant dense<0.000000e+00> : vector<8x256xf32>
    %70 = tpu.matmul %68, %69, %cst_33 {dimension_numbers = #tpu.dot_dimension_numbers<[1], [0], [0], [1], [0, 0, 1, 1], [], []>} : vector<8x512xf32>, vector<512x256xf32>, vector<8x256xf32> -> vector<8x256xf32>
    %c0_34 = arith.constant 0 : index
    %c0_35 = arith.constant 0 : index
    %71 = vector.load %arg11[%c0_34, %c0_35] : memref<1x256xf32, #tpu.memory_space<vmem>>, vector<1x256xf32>
    %72 = vector.broadcast %71 : vector<1x256xf32> to vector<8x256xf32>
    %73 = arith.addf %70, %72 : vector<8x256xf32>
    %cst_36 = arith.constant 2.000000e+01 : f32
    %74 = vector.broadcast %cst_36 : f32 to vector<8x256xf32>
    %75 = arith.minimumf %73, %74 : vector<8x256xf32>
    %76 = math.exp %75 : vector<8x256xf32>
    %cst_37 = arith.constant 2.000000e+00 : f32
    %77 = vector.broadcast %cst_37 : f32 to vector<8x256xf32>
    %78 = arith.addf %76, %77 : vector<8x256xf32>
    %79 = arith.mulf %76, %78 : vector<8x256xf32>
    %80 = arith.mulf %73, %79 : vector<8x256xf32>
    %cst_38 = arith.constant 2.000000e+00 : f32
    %81 = vector.broadcast %cst_38 : f32 to vector<8x256xf32>
    %82 = arith.addf %79, %81 : vector<8x256xf32>
    %83 = arith.divf %80, %82 : vector<8x256xf32>
    %c0_39 = arith.constant 0 : index
    %c0_40 = arith.constant 0 : index
    %84 = vector.load %arg12[%c0_39, %c0_40] : memref<1x256xf32, #tpu.memory_space<vmem>>, vector<1x256xf32>
    %c0_41 = arith.constant 0 : index
    %c0_42 = arith.constant 0 : index
    %85 = vector.load %arg13[%c0_41, %c0_42] : memref<1x256xf32, #tpu.memory_space<vmem>>, vector<1x256xf32>
    %cst_43 = arith.constant dense<0.000000e+00> : vector<8xf32>
    %86 = vector.multi_reduction <add>, %83, %cst_43 [1] : vector<8x256xf32> to vector<8xf32>
    %87 = vector.shape_cast %86 : vector<8xf32> to vector<8x1xf32>
    %cst_44 = arith.constant 3.906250e-03 : f32
    %88 = vector.broadcast %cst_44 : f32 to vector<8x1xf32>
    %89 = arith.mulf %87, %88 : vector<8x1xf32>
    %90 = arith.mulf %83, %83 : vector<8x256xf32>
    %cst_45 = arith.constant dense<0.000000e+00> : vector<8xf32>
    %91 = vector.multi_reduction <add>, %90, %cst_45 [1] : vector<8x256xf32> to vector<8xf32>
    %92 = vector.shape_cast %91 : vector<8xf32> to vector<8x1xf32>
    %cst_46 = arith.constant 3.906250e-03 : f32
    %93 = vector.broadcast %cst_46 : f32 to vector<8x1xf32>
    %94 = arith.mulf %92, %93 : vector<8x1xf32>
    %95 = arith.mulf %89, %89 : vector<8x1xf32>
    %96 = arith.subf %94, %95 : vector<8x1xf32>
    %cst_47 = arith.constant 9.99999974E-6 : f32
    %97 = vector.broadcast %cst_47 : f32 to vector<8x1xf32>
    %98 = arith.addf %96, %97 : vector<8x1xf32>
    %99 = math.rsqrt %98 : vector<8x1xf32>
    %100 = vector.broadcast %89 : vector<8x1xf32> to vector<8x256xf32>
    %101 = arith.subf %83, %100 : vector<8x256xf32>
    %102 = vector.broadcast %99 : vector<8x1xf32> to vector<8x256xf32>
    %103 = arith.mulf %101, %102 : vector<8x256xf32>
    %104 = vector.broadcast %84 : vector<1x256xf32> to vector<8x256xf32>
    %105 = arith.mulf %103, %104 : vector<8x256xf32>
    %106 = vector.broadcast %85 : vector<1x256xf32> to vector<8x256xf32>
    %107 = arith.addf %105, %106 : vector<8x256xf32>
    %c0_48 = arith.constant 0 : index
    %c0_49 = arith.constant 0 : index
    %108 = vector.load %arg14[%c0_48, %c0_49] : memref<256x128xf32, #tpu.memory_space<vmem>>, vector<256x128xf32>
    %cst_50 = arith.constant dense<0.000000e+00> : vector<8x128xf32>
    %109 = tpu.matmul %107, %108, %cst_50 {dimension_numbers = #tpu.dot_dimension_numbers<[1], [0], [0], [1], [0, 0, 1, 1], [], []>} : vector<8x256xf32>, vector<256x128xf32>, vector<8x128xf32> -> vector<8x128xf32>
    %c0_51 = arith.constant 0 : index
    %c0_52 = arith.constant 0 : index
    %110 = vector.load %arg15[%c0_51, %c0_52] : memref<1x128xf32, #tpu.memory_space<vmem>>, vector<1x128xf32>
    %111 = vector.broadcast %110 : vector<1x128xf32> to vector<8x128xf32>
    %112 = arith.addf %109, %111 : vector<8x128xf32>
    %cst_53 = arith.constant 2.000000e+01 : f32
    %113 = vector.broadcast %cst_53 : f32 to vector<8x128xf32>
    %114 = arith.minimumf %112, %113 : vector<8x128xf32>
    %115 = math.exp %114 : vector<8x128xf32>
    %cst_54 = arith.constant 2.000000e+00 : f32
    %116 = vector.broadcast %cst_54 : f32 to vector<8x128xf32>
    %117 = arith.addf %115, %116 : vector<8x128xf32>
    %118 = arith.mulf %115, %117 : vector<8x128xf32>
    %119 = arith.mulf %112, %118 : vector<8x128xf32>
    %cst_55 = arith.constant 2.000000e+00 : f32
    %120 = vector.broadcast %cst_55 : f32 to vector<8x128xf32>
    %121 = arith.addf %118, %120 : vector<8x128xf32>
    %122 = arith.divf %119, %121 : vector<8x128xf32>
    %c0_56 = arith.constant 0 : index
    %c0_57 = arith.constant 0 : index
    %123 = vector.load %arg16[%c0_56, %c0_57] : memref<1x128xf32, #tpu.memory_space<vmem>>, vector<1x128xf32>
    %c0_58 = arith.constant 0 : index
    %c0_59 = arith.constant 0 : index
    %124 = vector.load %arg17[%c0_58, %c0_59] : memref<1x128xf32, #tpu.memory_space<vmem>>, vector<1x128xf32>
    %cst_60 = arith.constant dense<0.000000e+00> : vector<8xf32>
    %125 = vector.multi_reduction <add>, %122, %cst_60 [1] : vector<8x128xf32> to vector<8xf32>
    %126 = vector.shape_cast %125 : vector<8xf32> to vector<8x1xf32>
    %cst_61 = arith.constant 1.250000e-02 : f32
    %127 = vector.broadcast %cst_61 : f32 to vector<8x1xf32>
    %128 = arith.mulf %126, %127 : vector<8x1xf32>
    %129 = arith.mulf %122, %122 : vector<8x128xf32>
    %cst_62 = arith.constant dense<0.000000e+00> : vector<8xf32>
    %130 = vector.multi_reduction <add>, %129, %cst_62 [1] : vector<8x128xf32> to vector<8xf32>
    %131 = vector.shape_cast %130 : vector<8xf32> to vector<8x1xf32>
    %cst_63 = arith.constant 1.250000e-02 : f32
    %132 = vector.broadcast %cst_63 : f32 to vector<8x1xf32>
    %133 = arith.mulf %131, %132 : vector<8x1xf32>
    %134 = arith.mulf %128, %128 : vector<8x1xf32>
    %135 = arith.subf %133, %134 : vector<8x1xf32>
    %cst_64 = arith.constant 9.99999974E-6 : f32
    %136 = vector.broadcast %cst_64 : f32 to vector<8x1xf32>
    %137 = arith.addf %135, %136 : vector<8x1xf32>
    %138 = math.rsqrt %137 : vector<8x1xf32>
    %139 = vector.broadcast %128 : vector<8x1xf32> to vector<8x128xf32>
    %140 = arith.subf %122, %139 : vector<8x128xf32>
    %141 = vector.broadcast %138 : vector<8x1xf32> to vector<8x128xf32>
    %142 = arith.mulf %140, %141 : vector<8x128xf32>
    %143 = vector.broadcast %123 : vector<1x128xf32> to vector<8x128xf32>
    %144 = arith.mulf %142, %143 : vector<8x128xf32>
    %145 = vector.broadcast %124 : vector<1x128xf32> to vector<8x128xf32>
    %146 = arith.addf %144, %145 : vector<8x128xf32>
    %c0_65 = arith.constant 0 : index
    %c0_66 = arith.constant 0 : index
    %147 = vector.load %arg18[%c0_65, %c0_66] : memref<8x128xf32, #tpu.memory_space<vmem>>, vector<8x128xf32>
    tpu.vector_store %arg18[%c0_65, %c0_66], %146 {strides = array<i32>} : memref<8x128xf32, #tpu.memory_space<vmem>>, vector<8x128xf32>,
    return
  }
  func.func @transform_0(%arg0: i32) -> (i32, i32) {
    %c0_i32 = arith.constant 0 : i32
    %c0_i32_0 = arith.constant 0 : i32
    return %arg0, %c0_i32 : i32, i32
  }
  func.func @transform_1(%arg0: i32) -> (i32, i32) {
    %c0_i32 = arith.constant 0 : i32
    %c0_i32_0 = arith.constant 0 : i32
    %c0_i32_1 = arith.constant 0 : i32
    return %c0_i32, %c0_i32_0 : i32, i32
  }
  func.func @transform_2(%arg0: i32) -> (i32, i32) {
    %c0_i32 = arith.constant 0 : i32
    %c0_i32_0 = arith.constant 0 : i32
    %c0_i32_1 = arith.constant 0 : i32
    return %c0_i32, %c0_i32_0 : i32, i32
  }
  func.func @transform_3(%arg0: i32) -> (i32, i32) {
    %c0_i32 = arith.constant 0 : i32
    %c0_i32_0 = arith.constant 0 : i32
    %c0_i32_1 = arith.constant 0 : i32
    return %c0_i32, %c0_i32_0 : i32, i32
  }
  func.func @transform_4(%arg0: i32) -> (i32, i32) {
    %c0_i32 = arith.constant 0 : i32
    %c0_i32_0 = arith.constant 0 : i32
    %c0_i32_1 = arith.constant 0 : i32
    return %c0_i32, %c0_i32_0 : i32, i32
  }
  func.func @transform_5(%arg0: i32) -> (i32, i32) {
    %c0_i32 = arith.constant 0 : i32
    %c0_i32_0 = arith.constant 0 : i32
    %c0_i32_1 = arith.constant 0 : i32
    return %c0_i32, %c0_i32_0 : i32, i32
  }
  func.func @transform_6(%arg0: i32) -> (i32, i32) {
    %c0_i32 = arith.constant 0 : i32
    %c0_i32_0 = arith.constant 0 : i32
    %c0_i32_1 = arith.constant 0 : i32
    return %c0_i32, %c0_i32_0 : i32, i32
  }
  func.func @transform_7(%arg0: i32) -> (i32, i32) {
    %c0_i32 = arith.constant 0 : i32
    %c0_i32_0 = arith.constant 0 : i32
    %c0_i32_1 = arith.constant 0 : i32
    return %c0_i32, %c0_i32_0 : i32, i32
  }
  func.func @transform_8(%arg0: i32) -> (i32, i32) {
    %c0_i32 = arith.constant 0 : i32
    %c0_i32_0 = arith.constant 0 : i32
    %c0_i32_1 = arith.constant 0 : i32
    return %c0_i32, %c0_i32_0 : i32, i32
  }
  func.func @transform_9(%arg0: i32) -> (i32, i32) {
    %c0_i32 = arith.constant 0 : i32
    %c0_i32_0 = arith.constant 0 : i32
    %c0_i32_1 = arith.constant 0 : i32
    return %c0_i32, %c0_i32_0 : i32, i32
  }
  func.func @transform_10(%arg0: i32) -> (i32, i32) {
    %c0_i32 = arith.constant 0 : i32
    %c0_i32_0 = arith.constant 0 : i32
    %c0_i32_1 = arith.constant 0 : i32
    return %c0_i32, %c0_i32_0 : i32, i32
  }
  func.func @transform_11(%arg0: i32) -> (i32, i32) {
    %c0_i32 = arith.constant 0 : i32
    %c0_i32_0 = arith.constant 0 : i32
    %c0_i32_1 = arith.constant 0 : i32
    return %c0_i32, %c0_i32_0 : i32, i32
  }
  func.func @transform_12(%arg0: i32) -> (i32, i32) {
    %c0_i32 = arith.constant 0 : i32
    %c0_i32_0 = arith.constant 0 : i32
    %c0_i32_1 = arith.constant 0 : i32
    return %c0_i32, %c0_i32_0 : i32, i32
  }
  func.func @transform_13(%arg0: i32) -> (i32, i32) {
    %c0_i32 = arith.constant 0 : i32
    %c0_i32_0 = arith.constant 0 : i32
    %c0_i32_1 = arith.constant 0 : i32
    return %c0_i32, %c0_i32_0 : i32, i32
  }
  func.func @transform_14(%arg0: i32) -> (i32, i32) {
    %c0_i32 = arith.constant 0 : i32
    %c0_i32_0 = arith.constant 0 : i32
    %c0_i32_1 = arith.constant 0 : i32
    return %c0_i32, %c0_i32_0 : i32, i32
  }
  func.func @transform_15(%arg0: i32) -> (i32, i32) {
    %c0_i32 = arith.constant 0 : i32
    %c0_i32_0 = arith.constant 0 : i32
    %c0_i32_1 = arith.constant 0 : i32
    return %c0_i32, %c0_i32_0 : i32, i32
  }
  func.func @transform_16(%arg0: i32) -> (i32, i32) {
    %c0_i32 = arith.constant 0 : i32
    %c0_i32_0 = arith.constant 0 : i32
    %c0_i32_1 = arith.constant 0 : i32
    return %c0_i32, %c0_i32_0 : i32, i32
  }
  func.func @transform_17(%arg0: i32) -> (i32, i32) {
    %c0_i32 = arith.constant 0 : i32
    %c0_i32_0 = arith.constant 0 : i32
    return %arg0, %c0_i32 : i32, i32
  }
}

</mosaic_0001>

<llo_original>
// kernel: dae_forward.1
$region0: #{dae_forward.1}
  #allocation0 [shape = 'u32[]', space=smem, size = 0x4, offset = 0x4, fixed_abs, tag = 'smem constant byte address 0x4 - core index']
  #allocation1 [shape = 'u32[144,128]{1,0:T(1,128)}', space=vmem, size = 0x12000, scoped, tag = 'internal scratch']
  %s0 = inlined_call_operand.vmem [shape: f32[8,256], index: 0, kind: input, shape index: {}]
  %s1 = inlined_call_operand.vmem [shape: f32[256,48], index: 1, kind: input, shape index: {}]
  %s2 = inlined_call_operand.vmem [shape: f32[1,48], index: 2, kind: input, shape index: {}]
  %s3 = inlined_call_operand.vmem [shape: f32[1,48], index: 3, kind: input, shape index: {}]
  %s4 = inlined_call_operand.vmem [shape: f32[1,48], index: 4, kind: input, shape index: {}]
  %s5 = inlined_call_operand.hbm [shape: f32[48,512], index: 5, kind: input, shape index: {}]
  %s6 = inlined_call_operand.vmem [shape: f32[1,512], index: 6, kind: input, shape index: {}]
  %s7 = inlined_call_operand.vmem [shape: f32[1,512], index: 7, kind: input, shape index: {}]
  %s8 = inlined_call_operand.vmem [shape: f32[1,512], index: 8, kind: input, shape index: {}]
  %s9 = inlined_call_operand.hbm [shape: f32[512,256], index: 9, kind: input, shape index: {}]
  %s10 = inlined_call_operand.vmem [shape: f32[1,256], index: 10, kind: input, shape index: {}]
  %s11 = inlined_call_operand.vmem [shape: f32[1,256], index: 11, kind: input, shape index: {}]
  %s12 = inlined_call_operand.vmem [shape: f32[1,256], index: 12, kind: input, shape index: {}]
  %s13 = inlined_call_operand.vmem [shape: f32[256,128], index: 13, kind: input, shape index: {}]
  %s14 = inlined_call_operand.vmem [shape: f32[1,128], index: 14, kind: input, shape index: {}]
  %s15 = inlined_call_operand.vmem [shape: f32[1,128], index: 15, kind: input, shape index: {}]
  %s16 = inlined_call_operand.vmem [shape: f32[1,128], index: 16, kind: input, shape index: {}]
  %s17 = inlined_call_operand.hbm [shape: f32[8,128], index: 17, kind: output, shape index: {}]
  %s18 = sld [smem:[#allocation0]]
  $region86: #{dae_forward.1} parent=0
    _
  %s20 = ssub.s32 1, %s18
  %s21 = scalar_select 0, %s20, %s18
  $region1: #{dae_forward.1} parent=0
    #allocation2 [shape = 'u8[98304]{0}', space=vmem, size = 0x18000, scoped, tag = 'input window, operand 5, single buffered']
    #allocation3 [shape = 's32[1]{0}', space=sflag, size = 0x4, scoped, tag = 'scoped memory for dae_forward.1']
    #allocation4 [shape = 's32[1]{0}', space=sflag, size = 0x4, scoped, tag = 'scoped memory for dae_forward.1']
    #allocation5 [shape = 'u8[524288]{0}', space=vmem, size = 0x80000, scoped, tag = 'input window, operand 9, single buffered']
    #allocation6 [shape = 's32[1]{0}', space=sflag, size = 0x4, scoped, tag = 'scoped memory for dae_forward.1']
    #allocation7 [shape = 'u8[4096]{0}', space=vmem, size = 0x1000, scoped, tag = 'output window, operand 0, single buffered']
    %22 = vsyncpa [#allocation3], 0
    %23 = vsyncpa [#allocation6], 0
    %24 = vsyncpa [#allocation4], 0
    // Predicated region
    $region2: #{dae_forward.1} parent=1 // pred_check
      _
    $region3: #{dae_forward.1} parent=1 // pred_check_branch
      %26 = sbr.rel (0) target = $region5
    $region4: #{dae_forward.1} parent=1 // pred_region
      _
    $region5: #{dae_forward.1} parent=1 // pred_fallthru
      _
    // Predicated region
    $region6: #{dae_forward.1} parent=1 // pred_check
      _
    $region7: #{dae_forward.1} parent=1 // pred_check_branch
      %28 = sbr.rel (0) target = $region9
    $region8: #{dae_forward.1} parent=1 // pred_region
      _
    $region9: #{dae_forward.1} parent=1 // pred_fallthru
      _
    // Predicated region
    $region10: #{dae_forward.1} parent=1 // pred_check
      _
    $region11: #{dae_forward.1} parent=1 // pred_check_branch
      %30 = sbr.rel (0) target = $region13
    $region12: #{dae_forward.1} parent=1 // pred_region
      _
    $region13: #{dae_forward.1} parent=1 // pred_fallthru
      _
    // Predicated region
    $region14: #{dae_forward.1} parent=1 // pred_check
      _
    $region15: #{dae_forward.1} parent=1 // pred_check_branch
      %32 = sbr.rel (0) target = $region17
    $region16: #{dae_forward.1} parent=1 // pred_region
      _
    $region17: #{dae_forward.1} parent=1 // pred_fallthru
      _
    // Predicated region
    $region18: #{dae_forward.1} parent=1 // pred_check
      _
    $region19: #{dae_forward.1} parent=1 // pred_check_branch
      %34 = sbr.rel (0) target = $region21
    $region20: #{dae_forward.1} parent=1 // pred_region
      _
    $region21: #{dae_forward.1} parent=1 // pred_fallthru
      _
    // Predicated region
    $region22: #{dae_forward.1} parent=1 // pred_check
      _
    $region23: #{dae_forward.1} parent=1 // pred_check_branch
      %36 = sbr.rel (0) target = $region25
    $region24: #{dae_forward.1} parent=1 // pred_region
      %s38 = ssub.s32 3072, 3072
      %39 = vsyncadd [#allocation3], %s38
      %s40 = sshll.u32 [#allocation2], 4
      %s41 = int_to_ptr.vmem [resolvable:$true] %s40
      %46 = dma.hbm_to_vmem [thread:$0]  %s5, 3072, %s41, [#allocation3], 512, 512, 32
    $region25: #{dae_forward.1} parent=1 // pred_fallthru
      _
    // Predicated region
    $region26: #{dae_forward.1} parent=1 // pred_check
      _
    $region27: #{dae_forward.1} parent=1 // pred_check_branch
      %48 = sbr.rel (0) target = $region29
    $region28: #{dae_forward.1} parent=1 // pred_region
      _
    $region29: #{dae_forward.1} parent=1 // pred_fallthru
      _
    // Predicated region
    $region30: #{dae_forward.1} parent=1 // pred_check
      _
    $region31: #{dae_forward.1} parent=1 // pred_check_branch
      %50 = sbr.rel (0) target = $region33
    $region32: #{dae_forward.1} parent=1 // pred_region
      _
    $region33: #{dae_forward.1} parent=1 // pred_fallthru
      _
    // Predicated region
    $region34: #{dae_forward.1} parent=1 // pred_check
      _
    $region35: #{dae_forward.1} parent=1 // pred_check_branch
      %52 = sbr.rel (0) target = $region37
    $region36: #{dae_forward.1} parent=1 // pred_region
      _
    $region37: #{dae_forward.1} parent=1 // pred_fallthru
      _
    // Predicated region
    $region38: #{dae_forward.1} parent=1 // pred_check
      _
    $region39: #{dae_forward.1} parent=1 // pred_check_branch
      %54 = sbr.rel (0) target = $region41
    $region40: #{dae_forward.1} parent=1 // pred_region
      %s56 = ssub.s32 16384, 16384
      %57 = vsyncadd [#allocation6], %s56
      %s58 = sshll.u32 [#allocation5], 4
      %s59 = int_to_ptr.vmem [resolvable:$true] %s58
      %64 = dma.hbm_to_vmem [thread:$0]  %s9, 16384, %s59, [#allocation6], 256, 256, 16
    $region41: #{dae_forward.1} parent=1 // pred_fallthru
      _
    // Predicated region
    $region42: #{dae_forward.1} parent=1 // pred_check
      _
    $region43: #{dae_forward.1} parent=1 // pred_check_branch
      %66 = sbr.rel (0) target = $region45
    $region44: #{dae_forward.1} parent=1 // pred_region
      _
    $region45: #{dae_forward.1} parent=1 // pred_fallthru
      _
    // Predicated region
    $region46: #{dae_forward.1} parent=1 // pred_check
      _
    $region47: #{dae_forward.1} parent=1 // pred_check_branch
      %68 = sbr.rel (0) target = $region49
    $region48: #{dae_forward.1} parent=1 // pred_region
      _
    $region49: #{dae_forward.1} parent=1 // pred_fallthru
      _
    // Predicated region
    $region50: #{dae_forward.1} parent=1 // pred_check
      _
    $region51: #{dae_forward.1} parent=1 // pred_check_branch
      %70 = sbr.rel (0) target = $region53
    $region52: #{dae_forward.1} parent=1 // pred_region
      _
    $region53: #{dae_forward.1} parent=1 // pred_fallthru
      _
    // Predicated region
    $region54: #{dae_forward.1} parent=1 // pred_check
      _
    $region55: #{dae_forward.1} parent=1 // pred_check_branch
      %72 = sbr.rel (0) target = $region57
    $region56: #{dae_forward.1} parent=1 // pred_region
      _
    $region57: #{dae_forward.1} parent=1 // pred_fallthru
      _
    // Predicated region
    $region58: #{dae_forward.1} parent=1 // pred_check
      _
    $region59: #{dae_forward.1} parent=1 // pred_check_branch
      %74 = sbr.rel (0) target = $region61
    $region60: #{dae_forward.1} parent=1 // pred_region
      _
    $region61: #{dae_forward.1} parent=1 // pred_fallthru
      _
    // Predicated region
    $region62: #{dae_forward.1} parent=1 // pred_check
      _
    $region63: #{dae_forward.1} parent=1 // pred_check_branch
      %76 = sbr.rel (0) target = $region65
    $region64: #{dae_forward.1} parent=1 // pred_region
      _
    $region65: #{dae_forward.1} parent=1 // pred_fallthru
      _
    // Predicated region
    $region66: #{dae_forward.1} parent=1 // pred_check
      _
    $region67: #{dae_forward.1} parent=1 // pred_check_branch
      %78 = sbr.rel (0) target = $region69
    $region68: #{dae_forward.1} parent=1 // pred_region
      _
    $region69: #{dae_forward.1} parent=1 // pred_fallthru
      _
    // Predicated region
    $region70: #{dae_forward.1} parent=1 // pred_check
      _
    $region71: #{dae_forward.1} parent=1 // pred_check_branch
      %80 = sbr.rel (0) target = $region73
    $region72: #{dae_forward.1} parent=1 // pred_region
      %81 = dma.done [#allocation3], 3072
    $region73: #{dae_forward.1} parent=1 // pred_fallthru
      _
    // Predicated region
    $region74: #{dae_forward.1} parent=1 // pred_check
      _
    $region75: #{dae_forward.1} parent=1 // pred_check_branch
      %83 = sbr.rel (0) target = $region77
    $region76: #{dae_forward.1} parent=1 // pred_region
      %84 = dma.done [#allocation6], 16384
    $region77: #{dae_forward.1} parent=1 // pred_fallthru
      _
    %v85 = vld [vmem:[%s0] sm:$0xff]
    %v86 = vld [vmem:[%s0 + $0x8] sm:$0xff]
    %v87 = vld [vmem:[%s1] sm:$0xff]
    %v88 = vld [vmem:[%s1 + $0x8] sm:$0xff]
    %v89 = vld [vmem:[%s1 + $0x10] sm:$0xff]
    %v90 = vld [vmem:[%s1 + $0x18] sm:$0xff]
    %v91 = vld [vmem:[%s1 + $0x20] sm:$0xff]
    %v92 = vld [vmem:[%s1 + $0x28] sm:$0xff]
    %v93 = vld [vmem:[%s1 + $0x30] sm:$0xff]
    %v94 = vld [vmem:[%s1 + $0x38] sm:$0xff]
    %v95 = vld [vmem:[%s1 + $0x40] sm:$0xff]
    %v96 = vld [vmem:[%s1 + $0x48] sm:$0xff]
    %v97 = vld [vmem:[%s1 + $0x50] sm:$0xff]
    %v98 = vld [vmem:[%s1 + $0x58] sm:$0xff]
    %v99 = vld [vmem:[%s1 + $0x60] sm:$0xff]
    %v100 = vld [vmem:[%s1 + $0x68] sm:$0xff]
    %v101 = vld [vmem:[%s1 + $0x70] sm:$0xff]
    %v102 = vld [vmem:[%s1 + $0x78] sm:$0xff]
    %v103 = vld [vmem:[%s1 + $0x80] sm:$0xff]
    %v104 = vld [vmem:[%s1 + $0x88] sm:$0xff]
    %v105 = vld [vmem:[%s1 + $0x90] sm:$0xff]
    %v106 = vld [vmem:[%s1 + $0x98] sm:$0xff]
    %v107 = vld [vmem:[%s1 + $0xa0] sm:$0xff]
    %v108 = vld [vmem:[%s1 + $0xa8] sm:$0xff]
    %v109 = vld [vmem:[%s1 + $0xb0] sm:$0xff]
    %v110 = vld [vmem:[%s1 + $0xb8] sm:$0xff]
    %v111 = vld [vmem:[%s1 + $0xc0] sm:$0xff]
    %v112 = vld [vmem:[%s1 + $0xc8] sm:$0xff]
    %v113 = vld [vmem:[%s1 + $0xd0] sm:$0xff]
    %v114 = vld [vmem:[%s1 + $0xd8] sm:$0xff]
    %v115 = vld [vmem:[%s1 + $0xe0] sm:$0xff]
    %v116 = vld [vmem:[%s1 + $0xe8] sm:$0xff]
    %v117 = vld [vmem:[%s1 + $0xf0] sm:$0xff]
    %v118 = vld [vmem:[%s1 + $0xf8] sm:$0xff]
    %v119 = vld [vmem:[%s2] sm:$0x1]
    %v121 = vlaneseq
    %v122 = vshrl.u32 %v121, 7
    %v123 = vsub.s32 0, %v122
    %v124 = vrot.slane %v119, %v123
    %126 = vmatprep.subr.mxu0 0.0
    %127 = vmatpush1.msra.mxu0 %v102
    %128 = vmatprep.subr.mxu0 0.0
    %129 = vmatpush1.msra.mxu0 %v101
    %130 = vmatprep.subr.mxu0 0.0
    %131 = vmatpush1.msra.mxu0 %v100
    %132 = vmatprep.subr.mxu0 0.0
    %133 = vmatpush1.msra.mxu0 %v99
    %134 = vmatprep.subr.mxu0 0.0
    %135 = vmatpush1.msra.mxu0 %v98
    %136 = vmatprep.subr.mxu0 0.0
    %137 = vmatpush1.msra.mxu0 %v97
    %138 = vmatprep.subr.mxu0 0.0
    %139 = vmatpush1.msra.mxu0 %v96
    %140 = vmatprep.subr.mxu0 0.0
    %141 = vmatpush1.msra.mxu0 %v95
    %142 = vmatprep.subr.mxu0 0.0
    %143 = vmatpush1.msra.mxu0 %v94
    %144 = vmatprep.subr.mxu0 0.0
    %145 = vmatpush1.msra.mxu0 %v93
    %146 = vmatprep.subr.mxu0 0.0
    %147 = vmatpush1.msra.mxu0 %v92
    %148 = vmatprep.subr.mxu0 0.0
    %149 = vmatpush1.msra.mxu0 %v91
    %150 = vmatprep.subr.mxu0 0.0
    %151 = vmatpush1.msra.mxu0 %v90
    %152 = vmatprep.subr.mxu0 0.0
    %153 = vmatpush1.msra.mxu0 %v89
    %154 = vmatprep.subr.mxu0 0.0
    %155 = vmatpush1.msra.mxu0 %v88
    %156 = vmatprep.subr.mxu0 0.0
    %157 = vmatpush1.msra.mxu0 %v87
    %158 = vmatprep.subr.mxu0 0.0
    %159 = vmatpush2.msra.mxu0 %v118
    %160 = vmatprep.subr.mxu0 0.0
    %161 = vmatpush2.msra.mxu0 %v117
    %162 = vmatprep.subr.mxu0 0.0
    %163 = vmatpush2.msra.mxu0 %v116
    %164 = vmatprep.subr.mxu0 0.0
    %165 = vmatpush2.msra.mxu0 %v115
    %166 = vmatprep.subr.mxu0 0.0
    %167 = vmatpush2.msra.mxu0 %v114
    %168 = vmatprep.subr.mxu0 0.0
    %169 = vmatpush2.msra.mxu0 %v113
    %170 = vmatprep.subr.mxu0 0.0
    %171 = vmatpush2.msra.mxu0 %v112
    %172 = vmatprep.subr.mxu0 0.0
    %173 = vmatpush2.msra.mxu0 %v111
    %174 = vmatprep.subr.mxu0 0.0
    %175 = vmatpush2.msra.mxu0 %v110
    %176 = vmatprep.subr.mxu0 0.0
    %177 = vmatpush2.msra.mxu0 %v109
    %178 = vmatprep.subr.mxu0 0.0
    %179 = vmatpush2.msra.mxu0 %v108
    %180 = vmatprep.subr.mxu0 0.0
    %181 = vmatpush2.msra.mxu0 %v107
    %182 = vmatprep.subr.mxu0 0.0
    %183 = vmatpush2.msra.mxu0 %v106
    %184 = vmatprep.subr.mxu0 0.0
    %185 = vmatpush2.msra.mxu0 %v105
    %186 = vmatprep.subr.mxu0 0.0
    %187 = vmatpush2.msra.mxu0 %v104
    %188 = vmatprep.subr.mxu0 0.0
    %189 = vmatpush2.msra.mxu0 %v103
    %190 = vmatprep.mubr.f32.mxu0 %v86
    %191 = vmatmul.mubr.f32.gmra.mxu0 %v85
    %v192 = vpop.f32.mrf.mxu0
    %v193 = vadd.f32 %v124, %v192
    %v194 = vpop.f32.mrf.mxu0
    %195 = vdwg.mxu0
    %v196 = vld [vmem:[%s3] sm:$0x1]
    %v197 = vld [vmem:[%s4] sm:$0x1]
    %vm198 = vcmask 392192
    %v199 = vsel %vm198, %v193, 0.0
    %200 = vadd.xlane.f32.xlu0 %v199
    %v201 = vpop.xlane.xlu0 %200
    %v202 = vmul.f32 %v201, 0.020833334
    %v203 = vmul.f32 %v193, %v193
    %v204 = vsel %vm198, %v203, 0.0
    %205 = vadd.xlane.f32.xlu0 %v204
    %v206 = vpop.xlane.xlu0 %205
    %v207 = vmul.f32 %v206, 0.020833334
    %v208 = vmul.f32 %v202, %v202
    %v209 = vsub.f32 %v207, %v208
    %v210 = vadd.f32 %v209, 1e-05
    %v211 = vrsqrt.pop %v210
    %v212 = vsub.f32 %v193, %v202
    %v213 = vmul.f32 %v212, %v211
    %v215 = vlaneseq
    %v216 = vshrl.u32 %v215, 7
    %v217 = vsub.s32 0, %v216
    %v218 = vrot.slane %v196, %v217
    %v220 = vmul.f32 %v213, %v218
    %v222 = vlaneseq
    %v223 = vshrl.u32 %v222, 7
    %v224 = vsub.s32 0, %v223
    %v225 = vrot.slane %v197, %v224
    %v227 = vadd.f32 %v220, %v225
    %v228 = vld [vmem:[#allocation2] sm:$0xff]
    %v229 = vld [vmem:[#allocation2 + $0x8] sm:$0xff]
    %v230 = vld [vmem:[#allocation2 + $0x10] sm:$0xff]
    %v231 = vld [vmem:[#allocation2 + $0x18] sm:$0xff]
    %v232 = vld [vmem:[#allocation2 + $0x20] sm:$0xff]
    %v233 = vld [vmem:[#allocation2 + $0x28] sm:$0xff]
    %v234 = vld [vmem:[#allocation2 + $0x30] sm:$0xff]
    %v235 = vld [vmem:[#allocation2 + $0x38] sm:$0xff]
    %v236 = vld [vmem:[#allocation2 + $0x40] sm:$0xff]
    %v237 = vld [vmem:[#allocation2 + $0x48] sm:$0xff]
    %v238 = vld [vmem:[#allocation2 + $0x50] sm:$0xff]
    %v239 = vld [vmem:[#allocation2 + $0x58] sm:$0xff]
    %v240 = vld [vmem:[#allocation2 + $0x60] sm:$0xff]
    %v241 = vld [vmem:[#allocation2 + $0x68] sm:$0xff]
    %v242 = vld [vmem:[#allocation2 + $0x70] sm:$0xff]
    %v243 = vld [vmem:[#allocation2 + $0x78] sm:$0xff]
    %v244 = vld [vmem:[#allocation2 + $0x80] sm:$0xff]
    %v245 = vld [vmem:[#allocation2 + $0x88] sm:$0xff]
    %v246 = vld [vmem:[#allocation2 + $0x90] sm:$0xff]
    %v247 = vld [vmem:[#allocation2 + $0x98] sm:$0xff]
    %v248 = vld [vmem:[#allocation2 + $0xa0] sm:$0xff]
    %v249 = vld [vmem:[#allocation2 + $0xa8] sm:$0xff]
    %v250 = vld [vmem:[#allocation2 + $0xb0] sm:$0xff]
    %v251 = vld [vmem:[#allocation2 + $0xb8] sm:$0xff]
    %v252 = vld [vmem:[%s6] sm:$0xf]
    %v254 = vlaneseq
    %v255 = vshrl.u32 %v254, 7
    %v256 = vsub.s32 0, %v255
    %v257 = vrot.slane %v252, %v256
    %v258 = vlaneseq
    %v259 = vshrl.u32 %v258, 7
    %v260 = vsub.s32 1, %v259
    %v261 = vrot.slane %v252, %v260
    %v262 = vlaneseq
    %v263 = vshrl.u32 %v262, 7
    %v264 = vsub.s32 2, %v263
    %v265 = vrot.slane %v252, %v264
    %v266 = vlaneseq
    %v267 = vshrl.u32 %v266, 7
    %v268 = vsub.s32 3, %v267
    %v269 = vrot.slane %v252, %v268
    %v275 = vsel %vm198, %v227, 0
    %277 = vmatprep.subr.mxu0 0.0
    %278 = vmatpush1.msra.mxu0 0.0
    %279 = vmatprep.subr.mxu0 0.0
    %280 = vmatpush1.msra.mxu0 0.0
    %281 = vmatprep.subr.mxu0 0.0
    %282 = vmatpush1.msra.mxu0 0.0
    %283 = vmatprep.subr.mxu0 0.0
    %284 = vmatpush1.msra.mxu0 0.0
    %285 = vmatprep.subr.mxu0 0.0
    %286 = vmatpush1.msra.mxu0 0.0
    %287 = vmatprep.subr.mxu0 0.0
    %288 = vmatpush1.msra.mxu0 0.0
    %289 = vmatprep.subr.mxu0 0.0
    %290 = vmatpush1.msra.mxu0 0.0
    %291 = vmatprep.subr.mxu0 0.0
    %292 = vmatpush1.msra.mxu0 0.0
    %293 = vmatprep.subr.mxu0 0.0
    %294 = vmatpush1.msra.mxu0 0.0
    %295 = vmatprep.subr.mxu0 0.0
    %296 = vmatpush1.msra.mxu0 0.0
    %297 = vmatprep.subr.mxu0 %v249
    %298 = vmatpush1.msra.mxu0 %v248
    %299 = vmatprep.subr.mxu0 %v245
    %300 = vmatpush1.msra.mxu0 %v244
    %301 = vmatprep.subr.mxu0 %v241
    %302 = vmatpush1.msra.mxu0 %v240
    %303 = vmatprep.subr.mxu0 %v237
    %304 = vmatpush1.msra.mxu0 %v236
    %305 = vmatprep.subr.mxu0 %v233
    %306 = vmatpush1.msra.mxu0 %v232
    %307 = vmatprep.subr.mxu0 %v229
    %308 = vmatpush1.msra.mxu0 %v228
    %309 = vmatprep.subr.mxu0 0.0
    %310 = vmatpush2.msra.mxu0 0.0
    %311 = vmatprep.subr.mxu0 0.0
    %312 = vmatpush2.msra.mxu0 0.0
    %313 = vmatprep.subr.mxu0 0.0
    %314 = vmatpush2.msra.mxu0 0.0
    %315 = vmatprep.subr.mxu0 0.0
    %316 = vmatpush2.msra.mxu0 0.0
    %317 = vmatprep.subr.mxu0 0.0
    %318 = vmatpush2.msra.mxu0 0.0
    %319 = vmatprep.subr.mxu0 0.0
    %320 = vmatpush2.msra.mxu0 0.0
    %321 = vmatprep.subr.mxu0 0.0
    %322 = vmatpush2.msra.mxu0 0.0
    %323 = vmatprep.subr.mxu0 0.0
    %324 = vmatpush2.msra.mxu0 0.0
    %325 = vmatprep.subr.mxu0 0.0
    %326 = vmatpush2.msra.mxu0 0.0
    %327 = vmatprep.subr.mxu0 0.0
    %328 = vmatpush2.msra.mxu0 0.0
    %329 = vmatprep.subr.mxu0 0.0
    %330 = vmatpush2.msra.mxu0 0.0
    %331 = vmatprep.subr.mxu0 0.0
    %332 = vmatpush2.msra.mxu0 0.0
    %333 = vmatprep.subr.mxu0 0.0
    %334 = vmatpush2.msra.mxu0 0.0
    %335 = vmatprep.subr.mxu0 0.0
    %336 = vmatpush2.msra.mxu0 0.0
    %337 = vmatprep.subr.mxu0 0.0
    %338 = vmatpush2.msra.mxu0 0.0
    %339 = vmatprep.subr.mxu0 0.0
    %340 = vmatpush2.msra.mxu0 0.0
    %341 = vmatprep.mubr.f32.mxu0 0.0
    %342 = vmatmul.mubr.f32.gmra.mxu0 %v275
    %v343 = vpop.f32.mrf.mxu0
    %v344 = vadd.f32 %v257, %v343
    %v345 = vpop.f32.mrf.mxu0
    %v346 = vadd.f32 %v261, %v345
    %347 = vdwg.mxu0
    %348 = vmatprep.subr.mxu0 0.0
    %349 = vmatpush1.msra.mxu0 0.0
    %350 = vmatprep.subr.mxu0 0.0
    %351 = vmatpush1.msra.mxu0 0.0
    %352 = vmatprep.subr.mxu0 0.0
    %353 = vmatpush1.msra.mxu0 0.0
    %354 = vmatprep.subr.mxu0 0.0
    %355 = vmatpush1.msra.mxu0 0.0
    %356 = vmatprep.subr.mxu0 0.0
    %357 = vmatpush1.msra.mxu0 0.0
    %358 = vmatprep.subr.mxu0 0.0
    %359 = vmatpush1.msra.mxu0 0.0
    %360 = vmatprep.subr.mxu0 0.0
    %361 = vmatpush1.msra.mxu0 0.0
    %362 = vmatprep.subr.mxu0 0.0
    %363 = vmatpush1.msra.mxu0 0.0
    %364 = vmatprep.subr.mxu0 0.0
    %365 = vmatpush1.msra.mxu0 0.0
    %366 = vmatprep.subr.mxu0 0.0
    %367 = vmatpush1.msra.mxu0 0.0
    %368 = vmatprep.subr.mxu0 %v251
    %369 = vmatpush1.msra.mxu0 %v250
    %370 = vmatprep.subr.mxu0 %v247
    %371 = vmatpush1.msra.mxu0 %v246
    %372 = vmatprep.subr.mxu0 %v243
    %373 = vmatpush1.msra.mxu0 %v242
    %374 = vmatprep.subr.mxu0 %v239
    %375 = vmatpush1.msra.mxu0 %v238
    %376 = vmatprep.subr.mxu0 %v235
    %377 = vmatpush1.msra.mxu0 %v234
    %378 = vmatprep.subr.mxu0 %v231
    %379 = vmatpush1.msra.mxu0 %v230
    %380 = vmatprep.subr.mxu0 0.0
    %381 = vmatpush2.msra.mxu0 0.0
    %382 = vmatprep.subr.mxu0 0.0
    %383 = vmatpush2.msra.mxu0 0.0
    %384 = vmatprep.subr.mxu0 0.0
    %385 = vmatpush2.msra.mxu0 0.0
    %386 = vmatprep.subr.mxu0 0.0
    %387 = vmatpush2.msra.mxu0 0.0
    %388 = vmatprep.subr.mxu0 0.0
    %389 = vmatpush2.msra.mxu0 0.0
    %390 = vmatprep.subr.mxu0 0.0
    %391 = vmatpush2.msra.mxu0 0.0
    %392 = vmatprep.subr.mxu0 0.0
    %393 = vmatpush2.msra.mxu0 0.0
    %394 = vmatprep.subr.mxu0 0.0
    %395 = vmatpush2.msra.mxu0 0.0
    %396 = vmatprep.subr.mxu0 0.0
    %397 = vmatpush2.msra.mxu0 0.0
    %398 = vmatprep.subr.mxu0 0.0
    %399 = vmatpush2.msra.mxu0 0.0
    %400 = vmatprep.subr.mxu0 0.0
    %401 = vmatpush2.msra.mxu0 0.0
    %402 = vmatprep.subr.mxu0 0.0
    %403 = vmatpush2.msra.mxu0 0.0
    %404 = vmatprep.subr.mxu0 0.0
    %405 = vmatpush2.msra.mxu0 0.0
    %406 = vmatprep.subr.mxu0 0.0
    %407 = vmatpush2.msra.mxu0 0.0
    %408 = vmatprep.subr.mxu0 0.0
    %409 = vmatpush2.msra.mxu0 0.0
    %410 = vmatprep.subr.mxu0 0.0
    %411 = vmatpush2.msra.mxu0 0.0
    %412 = vmatprep.mubr.f32.mxu0 0.0
    %413 = vmatmul.mubr.f32.gmra.mxu0 %v275
    %v414 = vpop.f32.mrf.mxu0
    %v415 = vadd.f32 %v265, %v414
    %v416 = vpop.f32.mrf.mxu0
    %v417 = vadd.f32 %v269, %v416
    %418 = vdwg.mxu0
    %v419 = vmin.f32 %v344, 20.0
    %v420 = vmin.f32 %v346, 20.0
    %v421 = vmin.f32 %v415, 20.0
    %v422 = vmin.f32 %v417, 20.0
    %v423 = vmul.f32 %v419, 1.442695
    %v424 = vpow.pop %v423
    %v425 = vmul.f32 %v420, 1.442695
    %v426 = vpow.pop %v425
    %v427 = vmul.f32 %v421, 1.442695
    %v428 = vpow.pop %v427
    %v429 = vmul.f32 %v422, 1.442695
    %v430 = vpow.pop %v429
    %v431 = vadd.f32 %v424, 2.0
    %v432 = vadd.f32 %v426, 2.0
    %v433 = vadd.f32 %v428, 2.0
    %v434 = vadd.f32 %v430, 2.0
    %v435 = vmul.f32 %v424, %v431
    %v436 = vmul.f32 %v426, %v432
    %v437 = vmul.f32 %v428, %v433
    %v438 = vmul.f32 %v430, %v434
    %v439 = vmul.f32 %v344, %v435
    %v440 = vmul.f32 %v346, %v436
    %v441 = vmul.f32 %v415, %v437
    %v442 = vmul.f32 %v417, %v438
    %v443 = vadd.f32 %v435, 2.0
    %v444 = vadd.f32 %v436, 2.0
    %v445 = vadd.f32 %v437, 2.0
    %v446 = vadd.f32 %v438, 2.0
    %v447 = vrcp.pop %v443
    %v448 = vmul.f32 %v439, %v447
    %v449 = vrcp.pop %v444
    %v450 = vmul.f32 %v440, %v449
    %v451 = vrcp.pop %v445
    %v452 = vmul.f32 %v441, %v451
    %v453 = vrcp.pop %v446
    %v454 = vmul.f32 %v442, %v453
    %v455 = vld [vmem:[%s7] sm:$0xf]
    %v456 = vld [vmem:[%s8] sm:$0xf]
    %v457 = vadd.f32 %v448, %v450
    %v458 = vadd.f32 %v457, %v452
    %v459 = vadd.f32 %v458, %v454
    %460 = vadd.xlane.f32.xlu0 %v459
    %v461 = vpop.xlane.xlu0 %460
    %v462 = vmul.f32 %v461, 0.001953125
    %v463 = vmul.f32 %v448, %v448
    %v464 = vmul.f32 %v450, %v450
    %v465 = vmul.f32 %v452, %v452
    %v466 = vmul.f32 %v454, %v454
    %v467 = vadd.f32 %v463, %v464
    %v468 = vadd.f32 %v467, %v465
    %v469 = vadd.f32 %v468, %v466
    %470 = vadd.xlane.f32.xlu0 %v469
    %v471 = vpop.xlane.xlu0 %470
    %v472 = vmul.f32 %v471, 0.001953125
    %v473 = vmul.f32 %v462, %v462
    %v474 = vsub.f32 %v472, %v473
    %v475 = vadd.f32 %v474, 1e-05
    %v476 = vrsqrt.pop %v475
    %v477 = vsub.f32 %v448, %v462
    %v478 = vsub.f32 %v450, %v462
    %v479 = vsub.f32 %v452, %v462
    %v480 = vsub.f32 %v454, %v462
    %v481 = vmul.f32 %v477, %v476
    %v482 = vmul.f32 %v478, %v476
    %v483 = vmul.f32 %v479, %v476
    %v484 = vmul.f32 %v480, %v476
    %v486 = vlaneseq
    %v487 = vshrl.u32 %v486, 7
    %v488 = vsub.s32 0, %v487
    %v489 = vrot.slane %v455, %v488
    %v490 = vlaneseq
    %v491 = vshrl.u32 %v490, 7
    %v492 = vsub.s32 1, %v491
    %v493 = vrot.slane %v455, %v492
    %v494 = vlaneseq
    %v495 = vshrl.u32 %v494, 7
    %v496 = vsub.s32 2, %v495
    %v497 = vrot.slane %v455, %v496
    %v498 = vlaneseq
    %v499 = vshrl.u32 %v498, 7
    %v500 = vsub.s32 3, %v499
    %v501 = vrot.slane %v455, %v500
    %v506 = vmul.f32 %v481, %v489
    %v507 = vmul.f32 %v482, %v493
    %v508 = vmul.f32 %v483, %v497
    %v509 = vmul.f32 %v484, %v501
    %v511 = vlaneseq
    %v512 = vshrl.u32 %v511, 7
    %v513 = vsub.s32 0, %v512
    %v514 = vrot.slane %v456, %v513
    %v515 = vlaneseq
    %v516 = vshrl.u32 %v515, 7
    %v517 = vsub.s32 1, %v516
    %v518 = vrot.slane %v456, %v517
    %v519 = vlaneseq
    %v520 = vshrl.u32 %v519, 7
    %v521 = vsub.s32 2, %v520
    %v522 = vrot.slane %v456, %v521
    %v523 = vlaneseq
    %v524 = vshrl.u32 %v523, 7
    %v525 = vsub.s32 3, %v524
    %v526 = vrot.slane %v456, %v525
    %v531 = vadd.f32 %v506, %v514
    %v532 = vadd.f32 %v507, %v518
    %v533 = vadd.f32 %v508, %v522
    %v534 = vadd.f32 %v509, %v526
    %v535 = vld [vmem:[#allocation5] sm:$0xff]
    %v536 = vld [vmem:[#allocation5 + $0x8] sm:$0xff]
    %v537 = vld [vmem:[#allocation5 + $0x10] sm:$0xff]
    %v538 = vld [vmem:[#allocation5 + $0x18] sm:$0xff]
    %v539 = vld [vmem:[#allocation5 + $0x20] sm:$0xff]
    %v540 = vld [vmem:[#allocation5 + $0x28] sm:$0xff]
    %v541 = vld [vmem:[#allocation5 + $0x30] sm:$0xff]
    %v542 = vld [vmem:[#allocation5 + $0x38] sm:$0xff]
    %v543 = vld [vmem:[#allocation5 + $0x40] sm:$0xff]
    %v544 = vld [vmem:[#allocation5 + $0x48] sm:$0xff]
    %v545 = vld [vmem:[#allocation5 + $0x50] sm:$0xff]
    %v546 = vld [vmem:[#allocation5 + $0x58] sm:$0xff]
    %v547 = vld [vmem:[#allocation5 + $0x60] sm:$0xff]
    %v548 = vld [vmem:[#allocation5 + $0x68] sm:$0xff]
    %v549 = vld [vmem:[#allocation5 + $0x70] sm:$0xff]
    %v550 = vld [vmem:[#allocation5 + $0x78] sm:$0xff]
    %v551 = vld [vmem:[#allocation5 + $0x80] sm:$0xff]
    %v552 = vld [vmem:[#allocation5 + $0x88] sm:$0xff]
    %v553 = vld [vmem:[#allocation5 + $0x90] sm:$0xff]
    %v554 = vld [vmem:[#allocation5 + $0x98] sm:$0xff]
    %v555 = vld [vmem:[#allocation5 + $0xa0] sm:$0xff]
    %v556 = vld [vmem:[#allocation5 + $0xa8] sm:$0xff]
    %v557 = vld [vmem:[#allocation5 + $0xb0] sm:$0xff]
    %v558 = vld [vmem:[#allocation5 + $0xb8] sm:$0xff]
    %v559 = vld [vmem:[#allocation5 + $0xc0] sm:$0xff]
    %v560 = vld [vmem:[#allocation5 + $0xc8] sm:$0xff]
    %v561 = vld [vmem:[#allocation5 + $0xd0] sm:$0xff]
    %v562 = vld [vmem:[#allocation5 + $0xd8] sm:$0xff]
    %v563 = vld [vmem:[#allocation5 + $0xe0] sm:$0xff]
    %v564 = vld [vmem:[#allocation5 + $0xe8] sm:$0xff]
    %v565 = vld [vmem:[#allocation5 + $0xf0] sm:$0xff]
    %v566 = vld [vmem:[#allocation5 + $0xf8] sm:$0xff]
    %v567 = vld [vmem:[#allocation5 + $0x100] sm:$0xff]
    %v568 = vld [vmem:[#allocation5 + $0x108] sm:$0xff]
    %v569 = vld [vmem:[#allocation5 + $0x110] sm:$0xff]
    %v570 = vld [vmem:[#allocation5 + $0x118] sm:$0xff]
    %v571 = vld [vmem:[#allocation5 + $0x120] sm:$0xff]
    %v572 = vld [vmem:[#allocation5 + $0x128] sm:$0xff]
    %v573 = vld [vmem:[#allocation5 + $0x130] sm:$0xff]
    %v574 = vld [vmem:[#allocation5 + $0x138] sm:$0xff]
    %v575 = vld [vmem:[#allocation5 + $0x140] sm:$0xff]
    %v576 = vld [vmem:[#allocation5 + $0x148] sm:$0xff]
    %v577 = vld [vmem:[#allocation5 + $0x150] sm:$0xff]
    %v578 = vld [vmem:[#allocation5 + $0x158] sm:$0xff]
    %v579 = vld [vmem:[#allocation5 + $0x160] sm:$0xff]
    %v580 = vld [vmem:[#allocation5 + $0x168] sm:$0xff]
    %v581 = vld [vmem:[#allocation5 + $0x170] sm:$0xff]
    %v582 = vld [vmem:[#allocation5 + $0x178] sm:$0xff]
    %v583 = vld [vmem:[#allocation5 + $0x180] sm:$0xff]
    %v584 = vld [vmem:[#allocation5 + $0x188] sm:$0xff]
    %v585 = vld [vmem:[#allocation5 + $0x190] sm:$0xff]
    %v586 = vld [vmem:[#allocation5 + $0x198] sm:$0xff]
    %v587 = vld [vmem:[#allocation5 + $0x1a0] sm:$0xff]
    %v588 = vld [vmem:[#allocation5 + $0x1a8] sm:$0xff]
    %v589 = vld [vmem:[#allocation5 + $0x1b0] sm:$0xff]
    %v590 = vld [vmem:[#allocation5 + $0x1b8] sm:$0xff]
    %v591 = vld [vmem:[#allocation5 + $0x1c0] sm:$0xff]
    %v592 = vld [vmem:[#allocation5 + $0x1c8] sm:$0xff]
    %v593 = vld [vmem:[#allocation5 + $0x1d0] sm:$0xff]
    %v594 = vld [vmem:[#allocation5 + $0x1d8] sm:$0xff]
    %v595 = vld [vmem:[#allocation5 + $0x1e0] sm:$0xff]
    %v596 = vld [vmem:[#allocation5 + $0x1e8] sm:$0xff]
    %v597 = vld [vmem:[#allocation5 + $0x1f0] sm:$0xff]
    %v598 = vld [vmem:[#allocation5 + $0x1f8] sm:$0xff]
    %v599 = vld [vmem:[#allocation5 + $0x200] sm:$0xff]
    %v600 = vld [vmem:[#allocation5 + $0x208] sm:$0xff]
    %v601 = vld [vmem:[#allocation5 + $0x210] sm:$0xff]
    %v602 = vld [vmem:[#allocation5 + $0x218] sm:$0xff]
    %v603 = vld [vmem:[#allocation5 + $0x220] sm:$0xff]
    %v604 = vld [vmem:[#allocation5 + $0x228] sm:$0xff]
    %v605 = vld [vmem:[#allocation5 + $0x230] sm:$0xff]
    %v606 = vld [vmem:[#allocation5 + $0x238] sm:$0xff]
    %v607 = vld [vmem:[#allocation5 + $0x240] sm:$0xff]
    %v608 = vld [vmem:[#allocation5 + $0x248] sm:$0xff]
    %v609 = vld [vmem:[#allocation5 + $0x250] sm:$0xff]
    %v610 = vld [vmem:[#allocation5 + $0x258] sm:$0xff]
    %v611 = vld [vmem:[#allocation5 + $0x260] sm:$0xff]
    %v612 = vld [vmem:[#allocation5 + $0x268] sm:$0xff]
    %v613 = vld [vmem:[#allocation5 + $0x270] sm:$0xff]
    %v614 = vld [vmem:[#allocation5 + $0x278] sm:$0xff]
    %v615 = vld [vmem:[#allocation5 + $0x280] sm:$0xff]
    %v616 = vld [vmem:[#allocation5 + $0x288] sm:$0xff]
    %v617 = vld [vmem:[#allocation5 + $0x290] sm:$0xff]
    %v618 = vld [vmem:[#allocation5 + $0x298] sm:$0xff]
    %v619 = vld [vmem:[#allocation5 + $0x2a0] sm:$0xff]
    %v620 = vld [vmem:[#allocation5 + $0x2a8] sm:$0xff]
    %v621 = vld [vmem:[#allocation5 + $0x2b0] sm:$0xff]
    %v622 = vld [vmem:[#allocation5 + $0x2b8] sm:$0xff]
    %v623 = vld [vmem:[#allocation5 + $0x2c0] sm:$0xff]
    %v624 = vld [vmem:[#allocation5 + $0x2c8] sm:$0xff]
    %v625 = vld [vmem:[#allocation5 + $0x2d0] sm:$0xff]
    %v626 = vld [vmem:[#allocation5 + $0x2d8] sm:$0xff]
    %v627 = vld [vmem:[#allocation5 + $0x2e0] sm:$0xff]
    %v628 = vld [vmem:[#allocation5 + $0x2e8] sm:$0xff]
    %v629 = vld [vmem:[#allocation5 + $0x2f0] sm:$0xff]
    %v630 = vld [vmem:[#allocation5 + $0x2f8] sm:$0xff]
    %v631 = vld [vmem:[#allocation5 + $0x300] sm:$0xff]
    %v632 = vld [vmem:[#allocation5 + $0x308] sm:$0xff]
    %v633 = vld [vmem:[#allocation5 + $0x310] sm:$0xff]
    %v634 = vld [vmem:[#allocation5 + $0x318] sm:$0xff]
    %v635 = vld [vmem:[#allocation5 + $0x320] sm:$0xff]
    %v636 = vld [vmem:[#allocation5 + $0x328] sm:$0xff]
    %v637 = vld [vmem:[#allocation5 + $0x330] sm:$0xff]
    %v638 = vld [vmem:[#allocation5 + $0x338] sm:$0xff]
    %v639 = vld [vmem:[#allocation5 + $0x340] sm:$0xff]
    %v640 = vld [vmem:[#allocation5 + $0x348] sm:$0xff]
    %v641 = vld [vmem:[#allocation5 + $0x350] sm:$0xff]
    %v642 = vld [vmem:[#allocation5 + $0x358] sm:$0xff]
    %v643 = vld [vmem:[#allocation5 + $0x360] sm:$0xff]
    %v644 = vld [vmem:[#allocation5 + $0x368] sm:$0xff]
    %v645 = vld [vmem:[#allocation5 + $0x370] sm:$0xff]
    %v646 = vld [vmem:[#allocation5 + $0x378] sm:$0xff]
    %v647 = vld [vmem:[#allocation5 + $0x380] sm:$0xff]
    %v648 = vld [vmem:[#allocation5 + $0x388] sm:$0xff]
    %v649 = vld [vmem:[#allocation5 + $0x390] sm:$0xff]
    %v650 = vld [vmem:[#allocation5 + $0x398] sm:$0xff]
    %v651 = vld [vmem:[#allocation5 + $0x3a0] sm:$0xff]
    %v652 = vld [vmem:[#allocation5 + $0x3a8] sm:$0xff]
    %v653 = vld [vmem:[#allocation5 + $0x3b0] sm:$0xff]
    %v654 = vld [vmem:[#allocation5 + $0x3b8] sm:$0xff]
    %v655 = vld [vmem:[#allocation5 + $0x3c0] sm:$0xff]
    %v656 = vld [vmem:[#allocation5 + $0x3c8] sm:$0xff]
    %v657 = vld [vmem:[#allocation5 + $0x3d0] sm:$0xff]
    %v658 = vld [vmem:[#allocation5 + $0x3d8] sm:$0xff]
    %v659 = vld [vmem:[#allocation5 + $0x3e0] sm:$0xff]
    %v660 = vld [vmem:[#allocation5 + $0x3e8] sm:$0xff]
    %v661 = vld [vmem:[#allocation5 + $0x3f0] sm:$0xff]
    %v662 = vld [vmem:[#allocation5 + $0x3f8] sm:$0xff]
    %v663 = vld [vmem:[%s10] sm:$0x3]
    %v665 = vlaneseq
    %v666 = vshrl.u32 %v665, 7
    %v667 = vsub.s32 0, %v666
    %v668 = vrot.slane %v663, %v667
    %v669 = vlaneseq
    %v670 = vshrl.u32 %v669, 7
    %v671 = vsub.s32 1, %v670
    %v672 = vrot.slane %v663, %v671
    %675 = vmatprep.subr.mxu0 %v566
    %676 = vmatpush1.msra.mxu0 %v565
    %677 = vmatprep.subr.mxu0 %v564
    %678 = vmatpush1.msra.mxu0 %v563
    %679 = vmatprep.subr.mxu0 %v562
    %680 = vmatpush1.msra.mxu0 %v561
    %681 = vmatprep.subr.mxu0 %v560
    %682 = vmatpush1.msra.mxu0 %v559
    %683 = vmatprep.subr.mxu0 %v558
    %684 = vmatpush1.msra.mxu0 %v557
    %685 = vmatprep.subr.mxu0 %v556
    %686 = vmatpush1.msra.mxu0 %v555
    %687 = vmatprep.subr.mxu0 %v554
    %688 = vmatpush1.msra.mxu0 %v553
    %689 = vmatprep.subr.mxu0 %v552
    %690 = vmatpush1.msra.mxu0 %v551
    %691 = vmatprep.subr.mxu0 %v550
    %692 = vmatpush1.msra.mxu0 %v549
    %693 = vmatprep.subr.mxu0 %v548
    %694 = vmatpush1.msra.mxu0 %v547
    %695 = vmatprep.subr.mxu0 %v546
    %696 = vmatpush1.msra.mxu0 %v545
    %697 = vmatprep.subr.mxu0 %v544
    %698 = vmatpush1.msra.mxu0 %v543
    %699 = vmatprep.subr.mxu0 %v542
    %700 = vmatpush1.msra.mxu0 %v541
    %701 = vmatprep.subr.mxu0 %v540
    %702 = vmatpush1.msra.mxu0 %v539
    %703 = vmatprep.subr.mxu0 %v538
    %704 = vmatpush1.msra.mxu0 %v537
    %705 = vmatprep.subr.mxu0 %v536
    %706 = vmatpush1.msra.mxu0 %v535
    %707 = vmatprep.subr.mxu0 %v598
    %708 = vmatpush2.msra.mxu0 %v597
    %709 = vmatprep.subr.mxu0 %v596
    %710 = vmatpush2.msra.mxu0 %v595
    %711 = vmatprep.subr.mxu0 %v594
    %712 = vmatpush2.msra.mxu0 %v593
    %713 = vmatprep.subr.mxu0 %v592
    %714 = vmatpush2.msra.mxu0 %v591
    %715 = vmatprep.subr.mxu0 %v590
    %716 = vmatpush2.msra.mxu0 %v589
    %717 = vmatprep.subr.mxu0 %v588
    %718 = vmatpush2.msra.mxu0 %v587
    %719 = vmatprep.subr.mxu0 %v586
    %720 = vmatpush2.msra.mxu0 %v585
    %721 = vmatprep.subr.mxu0 %v584
    %722 = vmatpush2.msra.mxu0 %v583
    %723 = vmatprep.subr.mxu0 %v582
    %724 = vmatpush2.msra.mxu0 %v581
    %725 = vmatprep.subr.mxu0 %v580
    %726 = vmatpush2.msra.mxu0 %v579
    %727 = vmatprep.subr.mxu0 %v578
    %728 = vmatpush2.msra.mxu0 %v577
    %729 = vmatprep.subr.mxu0 %v576
    %730 = vmatpush2.msra.mxu0 %v575
    %731 = vmatprep.subr.mxu0 %v574
    %732 = vmatpush2.msra.mxu0 %v573
    %733 = vmatprep.subr.mxu0 %v572
    %734 = vmatpush2.msra.mxu0 %v571
    %735 = vmatprep.subr.mxu0 %v570
    %736 = vmatpush2.msra.mxu0 %v569
    %737 = vmatprep.subr.mxu0 %v568
    %738 = vmatpush2.msra.mxu0 %v567
    %739 = vmatprep.mubr.f32.mxu0 %v532
    %740 = vmatmul.mubr.f32.gmra.mxu0 %v531
    %v741 = vpop.f32.mrf.mxu0
    %v742 = vadd.f32 %v668, %v741
    %v743 = vpop.f32.mrf.mxu0
    %v744 = vadd.f32 %v672, %v743
    %745 = vdwg.mxu0
    %746 = vmatprep.subr.mxu0 %v630
    %747 = vmatpush1.msra.mxu0 %v629
    %748 = vmatprep.subr.mxu0 %v628
    %749 = vmatpush1.msra.mxu0 %v627
    %750 = vmatprep.subr.mxu0 %v626
    %751 = vmatpush1.msra.mxu0 %v625
    %752 = vmatprep.subr.mxu0 %v624
    %753 = vmatpush1.msra.mxu0 %v623
    %754 = vmatprep.subr.mxu0 %v622
    %755 = vmatpush1.msra.mxu0 %v621
    %756 = vmatprep.subr.mxu0 %v620
    %757 = vmatpush1.msra.mxu0 %v619
    %758 = vmatprep.subr.mxu0 %v618
    %759 = vmatpush1.msra.mxu0 %v617
    %760 = vmatprep.subr.mxu0 %v616
    %761 = vmatpush1.msra.mxu0 %v615
    %762 = vmatprep.subr.mxu0 %v614
    %763 = vmatpush1.msra.mxu0 %v613
    %764 = vmatprep.subr.mxu0 %v612
    %765 = vmatpush1.msra.mxu0 %v611
    %766 = vmatprep.subr.mxu0 %v610
    %767 = vmatpush1.msra.mxu0 %v609
    %768 = vmatprep.subr.mxu0 %v608
    %769 = vmatpush1.msra.mxu0 %v607
    %770 = vmatprep.subr.mxu0 %v606
    %771 = vmatpush1.msra.mxu0 %v605
    %772 = vmatprep.subr.mxu0 %v604
    %773 = vmatpush1.msra.mxu0 %v603
    %774 = vmatprep.subr.mxu0 %v602
    %775 = vmatpush1.msra.mxu0 %v601
    %776 = vmatprep.subr.mxu0 %v600
    %777 = vmatpush1.msra.mxu0 %v599
    %778 = vmatprep.subr.mxu0 %v662
    %779 = vmatpush2.msra.mxu0 %v661
    %780 = vmatprep.subr.mxu0 %v660
    %781 = vmatpush2.msra.mxu0 %v659
    %782 = vmatprep.subr.mxu0 %v658
    %783 = vmatpush2.msra.mxu0 %v657
    %784 = vmatprep.subr.mxu0 %v656
    %785 = vmatpush2.msra.mxu0 %v655
    %786 = vmatprep.subr.mxu0 %v654
    %787 = vmatpush2.msra.mxu0 %v653
    %788 = vmatprep.subr.mxu0 %v652
    %789 = vmatpush2.msra.mxu0 %v651
    %790 = vmatprep.subr.mxu0 %v650
    %791 = vmatpush2.msra.mxu0 %v649
    %792 = vmatprep.subr.mxu0 %v648
    %793 = vmatpush2.msra.mxu0 %v647
    %794 = vmatprep.subr.mxu0 %v646
    %795 = vmatpush2.msra.mxu0 %v645
    %796 = vmatprep.subr.mxu0 %v644
    %797 = vmatpush2.msra.mxu0 %v643
    %798 = vmatprep.subr.mxu0 %v642
    %799 = vmatpush2.msra.mxu0 %v641
    %800 = vmatprep.subr.mxu0 %v640
    %801 = vmatpush2.msra.mxu0 %v639
    %802 = vmatprep.subr.mxu0 %v638
    %803 = vmatpush2.msra.mxu0 %v637
    %804 = vmatprep.subr.mxu0 %v636
    %805 = vmatpush2.msra.mxu0 %v635
    %806 = vmatprep.subr.mxu0 %v634
    %807 = vmatpush2.msra.mxu0 %v633
    %808 = vmatprep.subr.mxu0 %v632
    %809 = vmatpush2.msra.mxu0 %v631
    %810 = vmatprep.mubr.f32.mxu0 %v534
    %811 = vmatmul.mubr.f32.gmra.mxu0 %v533
    %v812 = vpop.f32.mrf.mxu0
    %v813 = vadd.f32 %v742, %v812
    %v814 = vpop.f32.mrf.mxu0
    %v815 = vadd.f32 %v744, %v814
    %816 = vdwg.mxu0
    %v817 = vmin.f32 %v813, 20.0
    %v818 = vmin.f32 %v815, 20.0
    %v819 = vmul.f32 %v817, 1.442695
    %v820 = vpow.pop %v819
    %v821 = vmul.f32 %v818, 1.442695
    %v822 = vpow.pop %v821
    %v823 = vadd.f32 %v820, 2.0
    %v824 = vadd.f32 %v822, 2.0
    %v825 = vmul.f32 %v820, %v823
    %v826 = vmul.f32 %v822, %v824
    %v827 = vmul.f32 %v813, %v825
    %v828 = vmul.f32 %v815, %v826
    %v829 = vadd.f32 %v825, 2.0
    %v830 = vadd.f32 %v826, 2.0
    %v831 = vrcp.pop %v829
    %v832 = vmul.f32 %v827, %v831
    %v833 = vrcp.pop %v830
    %v834 = vmul.f32 %v828, %v833
    %v835 = vld [vmem:[%s11] sm:$0x3]
    %v836 = vld [vmem:[%s12] sm:$0x3]
    %v837 = vadd.f32 %v832, %v834
    %838 = vadd.xlane.f32.xlu0 %v837
    %v839 = vpop.xlane.xlu0 %838
    %v840 = vmul.f32 %v839, 0.00390625
    %v841 = vmul.f32 %v832, %v832
    %v842 = vmul.f32 %v834, %v834
    %v843 = vadd.f32 %v841, %v842
    %844 = vadd.xlane.f32.xlu0 %v843
    %v845 = vpop.xlane.xlu0 %844
    %v846 = vmul.f32 %v845, 0.00390625
    %v847 = vmul.f32 %v840, %v840
    %v848 = vsub.f32 %v846, %v847
    %v849 = vadd.f32 %v848, 1e-05
    %v850 = vrsqrt.pop %v849
    %v851 = vsub.f32 %v832, %v840
    %v852 = vsub.f32 %v834, %v840
    %v853 = vmul.f32 %v851, %v850
    %v854 = vmul.f32 %v852, %v850
    %v856 = vlaneseq
    %v857 = vshrl.u32 %v856, 7
    %v858 = vsub.s32 0, %v857
    %v859 = vrot.slane %v835, %v858
    %v860 = vlaneseq
    %v861 = vshrl.u32 %v860, 7
    %v862 = vsub.s32 1, %v861
    %v863 = vrot.slane %v835, %v862
    %v866 = vmul.f32 %v853, %v859
    %v867 = vmul.f32 %v854, %v863
    %v869 = vlaneseq
    %v870 = vshrl.u32 %v869, 7
    %v871 = vsub.s32 0, %v870
    %v872 = vrot.slane %v836, %v871
    %v873 = vlaneseq
    %v874 = vshrl.u32 %v873, 7
    %v875 = vsub.s32 1, %v874
    %v876 = vrot.slane %v836, %v875
    %v879 = vadd.f32 %v866, %v872
    %v880 = vadd.f32 %v867, %v876
    %v881 = vld [vmem:[%s13] sm:$0xff]
    %v882 = vld [vmem:[%s13 + $0x8] sm:$0xff]
    %v883 = vld [vmem:[%s13 + $0x10] sm:$0xff]
    %v884 = vld [vmem:[%s13 + $0x18] sm:$0xff]
    %v885 = vld [vmem:[%s13 + $0x20] sm:$0xff]
    %v886 = vld [vmem:[%s13 + $0x28] sm:$0xff]
    %v887 = vld [vmem:[%s13 + $0x30] sm:$0xff]
    %v888 = vld [vmem:[%s13 + $0x38] sm:$0xff]
    %v889 = vld [vmem:[%s13 + $0x40] sm:$0xff]
    %v890 = vld [vmem:[%s13 + $0x48] sm:$0xff]
    %v891 = vld [vmem:[%s13 + $0x50] sm:$0xff]
    %v892 = vld [vmem:[%s13 + $0x58] sm:$0xff]
    %v893 = vld [vmem:[%s13 + $0x60] sm:$0xff]
    %v894 = vld [vmem:[%s13 + $0x68] sm:$0xff]
    %v895 = vld [vmem:[%s13 + $0x70] sm:$0xff]
    %v896 = vld [vmem:[%s13 + $0x78] sm:$0xff]
    %v897 = vld [vmem:[%s13 + $0x80] sm:$0xff]
    %v898 = vld [vmem:[%s13 + $0x88] sm:$0xff]
    %v899 = vld [vmem:[%s13 + $0x90] sm:$0xff]
    %v900 = vld [vmem:[%s13 + $0x98] sm:$0xff]
    %v901 = vld [vmem:[%s13 + $0xa0] sm:$0xff]
    %v902 = vld [vmem:[%s13 + $0xa8] sm:$0xff]
    %v903 = vld [vmem:[%s13 + $0xb0] sm:$0xff]
    %v904 = vld [vmem:[%s13 + $0xb8] sm:$0xff]
    %v905 = vld [vmem:[%s13 + $0xc0] sm:$0xff]
    %v906 = vld [vmem:[%s13 + $0xc8] sm:$0xff]
    %v907 = vld [vmem:[%s13 + $0xd0] sm:$0xff]
    %v908 = vld [vmem:[%s13 + $0xd8] sm:$0xff]
    %v909 = vld [vmem:[%s13 + $0xe0] sm:$0xff]
    %v910 = vld [vmem:[%s13 + $0xe8] sm:$0xff]
    %v911 = vld [vmem:[%s13 + $0xf0] sm:$0xff]
    %v912 = vld [vmem:[%s13 + $0xf8] sm:$0xff]
    %v913 = vld [vmem:[%s14] sm:$0x1]
    %v915 = vlaneseq
    %v916 = vshrl.u32 %v915, 7
    %v917 = vsub.s32 0, %v916
    %v918 = vrot.slane %v913, %v917
    %920 = vmatprep.subr.mxu0 0.0
    %921 = vmatpush1.msra.mxu0 %v896
    %922 = vmatprep.subr.mxu0 0.0
    %923 = vmatpush1.msra.mxu0 %v895
    %924 = vmatprep.subr.mxu0 0.0
    %925 = vmatpush1.msra.mxu0 %v894
    %926 = vmatprep.subr.mxu0 0.0
    %927 = vmatpush1.msra.mxu0 %v893
    %928 = vmatprep.subr.mxu0 0.0
    %929 = vmatpush1.msra.mxu0 %v892
    %930 = vmatprep.subr.mxu0 0.0
    %931 = vmatpush1.msra.mxu0 %v891
    %932 = vmatprep.subr.mxu0 0.0
    %933 = vmatpush1.msra.mxu0 %v890
    %934 = vmatprep.subr.mxu0 0.0
    %935 = vmatpush1.msra.mxu0 %v889
    %936 = vmatprep.subr.mxu0 0.0
    %937 = vmatpush1.msra.mxu0 %v888
    %938 = vmatprep.subr.mxu0 0.0
    %939 = vmatpush1.msra.mxu0 %v887
    %940 = vmatprep.subr.mxu0 0.0
    %941 = vmatpush1.msra.mxu0 %v886
    %942 = vmatprep.subr.mxu0 0.0
    %943 = vmatpush1.msra.mxu0 %v885
    %944 = vmatprep.subr.mxu0 0.0
    %945 = vmatpush1.msra.mxu0 %v884
    %946 = vmatprep.subr.mxu0 0.0
    %947 = vmatpush1.msra.mxu0 %v883
    %948 = vmatprep.subr.mxu0 0.0
    %949 = vmatpush1.msra.mxu0 %v882
    %950 = vmatprep.subr.mxu0 0.0
    %951 = vmatpush1.msra.mxu0 %v881
    %952 = vmatprep.subr.mxu0 0.0
    %953 = vmatpush2.msra.mxu0 %v912
    %954 = vmatprep.subr.mxu0 0.0
    %955 = vmatpush2.msra.mxu0 %v911
    %956 = vmatprep.subr.mxu0 0.0
    %957 = vmatpush2.msra.mxu0 %v910
    %958 = vmatprep.subr.mxu0 0.0
    %959 = vmatpush2.msra.mxu0 %v909
    %960 = vmatprep.subr.mxu0 0.0
    %961 = vmatpush2.msra.mxu0 %v908
    %962 = vmatprep.subr.mxu0 0.0
    %963 = vmatpush2.msra.mxu0 %v907
    %964 = vmatprep.subr.mxu0 0.0
    %965 = vmatpush2.msra.mxu0 %v906
    %966 = vmatprep.subr.mxu0 0.0
    %967 = vmatpush2.msra.mxu0 %v905
    %968 = vmatprep.subr.mxu0 0.0
    %969 = vmatpush2.msra.mxu0 %v904
    %970 = vmatprep.subr.mxu0 0.0
    %971 = vmatpush2.msra.mxu0 %v903
    %972 = vmatprep.subr.mxu0 0.0
    %973 = vmatpush2.msra.mxu0 %v902
    %974 = vmatprep.subr.mxu0 0.0
    %975 = vmatpush2.msra.mxu0 %v901
    %976 = vmatprep.subr.mxu0 0.0
    %977 = vmatpush2.msra.mxu0 %v900
    %978 = vmatprep.subr.mxu0 0.0
    %979 = vmatpush2.msra.mxu0 %v899
    %980 = vmatprep.subr.mxu0 0.0
    %981 = vmatpush2.msra.mxu0 %v898
    %982 = vmatprep.subr.mxu0 0.0
    %983 = vmatpush2.msra.mxu0 %v897
    %984 = vmatprep.mubr.f32.mxu0 %v880
    %985 = vmatmul.mubr.f32.gmra.mxu0 %v879
    %v986 = vpop.f32.mrf.mxu0
    %v987 = vadd.f32 %v918, %v986
    %v988 = vpop.f32.mrf.mxu0
    %989 = vdwg.mxu0
    %v990 = vmin.f32 %v987, 20.0
    %v991 = vmul.f32 %v990, 1.442695
    %v992 = vpow.pop %v991
    %v993 = vadd.f32 %v992, 2.0
    %v994 = vmul.f32 %v992, %v993
    %v995 = vmul.f32 %v987, %v994
    %v996 = vadd.f32 %v994, 2.0
    %v997 = vrcp.pop %v996
    %v998 = vmul.f32 %v995, %v997
    %v999 = vld [vmem:[%s15] sm:$0x1]
    %v1000 = vld [vmem:[%s16] sm:$0x1]
    %1001 = vadd.xlane.f32.xlu0 %v998
    %v1002 = vpop.xlane.xlu0 %1001
    %v1003 = vmul.f32 %v1002, 0.0125
    %v1004 = vmul.f32 %v998, %v998
    %1005 = vadd.xlane.f32.xlu0 %v1004
    %v1006 = vpop.xlane.xlu0 %1005
    %v1007 = vmul.f32 %v1006, 0.0125
    %v1008 = vmul.f32 %v1003, %v1003
    %v1009 = vsub.f32 %v1007, %v1008
    %v1010 = vadd.f32 %v1009, 1e-05
    %v1011 = vrsqrt.pop %v1010
    %v1012 = vsub.f32 %v998, %v1003
    %v1013 = vmul.f32 %v1012, %v1011
    %v1015 = vlaneseq
    %v1016 = vshrl.u32 %v1015, 7
    %v1017 = vsub.s32 0, %v1016
    %v1018 = vrot.slane %v999, %v1017
    %v1020 = vmul.f32 %v1013, %v1018
    %v1022 = vlaneseq
    %v1023 = vshrl.u32 %v1022, 7
    %v1024 = vsub.s32 0, %v1023
    %v1025 = vrot.slane %v1000, %v1024
    %v1027 = vadd.f32 %v1020, %v1025
    %1028 = vst [vmem:[#allocation7] sm:$0xff] %v1027
    // Predicated region
    $region78: #{dae_forward.1} parent=1 // pred_check
      _
    $region79: #{dae_forward.1} parent=1 // pred_check_branch
      %1030 = sbr.rel (0) target = $region81
    $region80: #{dae_forward.1} parent=1 // pred_region
      %s1032 = ssub.s32 128, 128
      %1033 = vsyncadd [#allocation4], %s1032
      %s1035 = sshll.u32 [#allocation7], 4
      %s1036 = int_to_ptr.vmem [resolvable:$true] %s1035
      %1038 = dma.vmem_to_hbm [thread:$0]  %s1036, 128, %s17, [#allocation4]
    $region81: #{dae_forward.1} parent=1 // pred_fallthru
      _
    // Predicated region
    $region82: #{dae_forward.1} parent=1 // pred_check
      _
    $region83: #{dae_forward.1} parent=1 // pred_check_branch
      %1040 = sbr.rel (0) target = $region85
    $region84: #{dae_forward.1} parent=1 // pred_region
      %1041 = dma.done [#allocation4], 128
    $region85: #{dae_forward.1} parent=1 // pred_fallthru
      _
    %1042 = vsyncpa [#allocation3], 1
    %1043 = vsyncpa [#allocation6], 1
    %1044 = vsyncpa [#allocation4], 1

</llo_original>
